<compile_context>
chip_gen: v7x
topology: tpu7x:2x2x1
jax: 0.10.0
libtpu: 0.0.40
codegen_flags: <defaults>
</compile_context>

<pallas_src>
import functools

import jax
import jax.numpy as jnp
from jax import lax
from jax.experimental import pallas as pl
from jax.experimental.pallas import tpu as pltpu

NEG_SLOPE = 0.01   # torch.nn.LeakyReLU default
BN_EPS = 1e-5      # torch.nn.BatchNorm1d default

H1, H2, H3 = 12, 36, 12          # fixed hidden widths of the module
G = 8                            # batch rows packed per vreg row (row->lane)


def _round_up(x, m):
    return ((x + m - 1) // m) * m


def _cdiv(a, b):
    return (a + b - 1) // b


def _leaky_relu(x):
    # max(x, a*x) == LeakyReLU(x) for 0 < a < 1 (mul+max instead of cmp+mul+sel).
    return jnp.maximum(x, NEG_SLOPE * x)


# ----------------------------------------------------------------------------
# Parameter packing: one 8-row-aligned (rows, lane) f32 buffer (single DMA)
# holding G-fold block-diagonal weights and G-lane-tiled bias/gamma/beta rows.
# ----------------------------------------------------------------------------
def _param_layout(num_params, n_out):
    lane = _round_up(max(G * H1, G * H2, G * H3, G * n_out), 128)
    off = {}
    r = 0

    def slot(name, nrows):
        nonlocal r
        off[name] = r
        r += _round_up(nrows, 8)

    slot("w1", G * num_params)
    slot("b1", 1); slot("g1", 1); slot("be1", 1)
    slot("w2", G * H1)
    slot("b2", 1); slot("g2", 1); slot("be2", 1)
    slot("w3", G * H2)
    slot("b3", 1); slot("g3", 1); slot("be3", 1)
    slot("w4", G * H3)
    slot("b4", 1)
    return off, r, lane


def pack_params(params, num_params, n_out):
    off, rows, lane = _param_layout(num_params, n_out)
    eye = jnp.eye(G, dtype=jnp.float32)

    def bd(w):   # block-diagonal replication: (fi, fo) -> (G*fi, G*fo)
        return jnp.kron(eye, jnp.asarray(w, jnp.float32))

    def tl(v):   # lane-tile a (1, f) row G times -> (1, G*f)
        return jnp.tile(jnp.asarray(v, jnp.float32), (1, G))

    tensors = {
        "w1": bd(params["w1"]), "b1": tl(params["b1"]),
        "g1": tl(params["g1"]), "be1": tl(params["be1"]),
        "w2": bd(params["w2"]), "b2": tl(params["b2"]),
        "g2": tl(params["g2"]), "be2": tl(params["be2"]),
        "w3": bd(params["w3"]), "b3": tl(params["b3"]),
        "g3": tl(params["g3"]), "be3": tl(params["be3"]),
        "w4": bd(params["w4"]), "b4": tl(params["b4"]),
    }
    pk = jnp.zeros((rows, lane), dtype=jnp.float32)
    for name, a in tensors.items():
        pk = pk.at[off[name]:off[name] + a.shape[0], 0:a.shape[1]].set(a)
    return pk, off, rows, lane


# ----------------------------------------------------------------------------
# VMEM sizing (per-generation aware; falls back to the v7x 64 MiB capacity).
# ----------------------------------------------------------------------------
def _vmem_capacity_bytes():
    try:
        info = pltpu.get_tpu_info()
        for attr in ("vmem_capacity_bytes", "vmem_size_bytes", "vmem_bytes"):
            v = getattr(info, attr, None)
            if v:
                return int(v)
    except Exception:
        pass
    return 64 << 20   # v7x-safe fallback


def _per_row_bytes(num_params, n_out):
    f32 = 4
    lane_in = _round_up(G * num_params, 128)
    lane_out = _round_up(G * n_out, 128)
    lanes_h = (_round_up(G * H1, 128) + _round_up(G * H2, 128)
               + _round_up(G * H3, 128))
    # 2x double-buffered in/out blocks; 3x generous liveness estimate for the
    # activation chain + MXU result copies + last-tile mask temporaries.
    return f32 * (2 * lane_in + 2 * lane_out + 3 * lanes_h)


def _fixed_bytes(rows, lane, lane_ss):
    f32 = 4
    return f32 * (2 * rows * lane + 4 * 48 * lane_ss + 16 * lane_ss) + (4 << 20)


# ----------------------------------------------------------------------------
# Call A: BatchNorm statistics.  grid = (bn_layer, batch_tile), both axes
# sequential ("arbitrary"): the batch axis is the reduction axis and layer k+1's
# stats need layer k's finalized scale/shift.
# NOTE: the ss output block has a constant index_map, so it stays VMEM-resident
# and readable across all grid iterations of this call (relied upon by passes
# p=1/p=2 reading the p=0/p=1 results; exercised by the multi-tile test below).
# ss layout: scale_k at row 8*k, shift_k at row 24 + 8*k, lanes 0:G*C_k (tiled).
# acc layout: row 0 = sum, row 8 = sum of squares, lanes 0:G*C_k.
# ----------------------------------------------------------------------------
def _stats_kernel(num_params, batch, padded_batch, tile_rows, off,
                  y_ref, pk_ref, ss_ref, acc_ref):
    p = pl.program_id(0)                      # which BN layer this pass covers
    i = pl.program_id(1)                      # batch tile
    last_tile = pl.num_programs(1) - 1

    @pl.when(jnp.logical_and(p == 0, i == 0))
    def _init_ss():
        ss_ref[...] = jnp.zeros_like(ss_ref)

    y = y_ref[...]
    cP = G * num_params
    c1, c2, c3 = G * H1, G * H2, G * H3

    w1 = pk_ref[off["w1"]:off["w1"] + cP, 0:c1]
    b1 = pk_ref[off["b1"]:off["b1"] + 1, 0:c1]
    a1 = _leaky_relu(jnp.dot(y, w1, preferred_element_type=jnp.float32) + b1)

    def accumulate(a, h):
        c = G * h

        @pl.when(i == 0)
        def _zero():
            acc_ref[...] = jnp.zeros_like(acc_ref)

        def add(v):
            acc_ref[0:1, 0:c] += jnp.sum(v, axis=0, keepdims=True)
            acc_ref[8:9, 0:c] += jnp.sum(v * v, axis=0, keepdims=True)

        if padded_batch != batch:      # static: only the LAST tile has pad rows
            @pl.when(i == last_tile)
            def _masked():
                lane = lax.broadcasted_iota(jnp.int32, a.shape, 1)
                grp = jnp.zeros(a.shape, jnp.int32)
                for g in range(1, G):  # grp = lane // h without a vector divide
                    grp = grp + (lane >= g * h).astype(jnp.int32)
                row = lax.broadcasted_iota(jnp.int32, a.shape, 0)
                orig = (i * tile_rows + row) * G + grp
                add(jnp.where(orig < batch, a, 0.0))

            @pl.when(i != last_tile)
            def _plain():
                add(a)
        else:
            add(a)

    def finalize(layer, h):
        c = G * h
        gname, bname = "g%d" % (layer + 1), "be%d" % (layer + 1)
        gamma_t = pk_ref[off[gname]:off[gname] + 1, 0:c]
        beta_t = pk_ref[off[bname]:off[bname] + 1, 0:c]

        @pl.when(i == last_tile)
        def _fold():
            s1 = acc_ref[0:1, 0:c]
            s2 = acc_ref[8:9, 0:c]
            t1 = s1[:, 0:h]
            t2 = s2[:, 0:h]
            for g in range(1, G):          # reduce the G lane groups -> (1, h)
                t1 = t1 + s1[:, g * h:(g + 1) * h]
                t2 = t2 + s2[:, g * h:(g + 1) * h]
            inv_b = 1.0 / float(batch)
            mean = t1 * inv_b
            var = jnp.maximum(t2 * inv_b - mean * mean, 0.0)   # clamp cancellation
            rstd = lax.rsqrt(var + BN_EPS)
            scale_t = jnp.concatenate([rstd] * G, axis=1) * gamma_t
            mean_t = jnp.concatenate([mean] * G, axis=1)
            shift_t = beta_t - mean_t * scale_t
            ss_ref[8 * layer:8 * layer + 1, 0:c] = scale_t
            ss_ref[24 + 8 * layer:24 + 8 * layer + 1, 0:c] = shift_t

    @pl.when(p == 0)
    def _pass0():
        accumulate(a1, H1)
        finalize(0, H1)

    def layer2(a1v):
        h1 = a1v * ss_ref[0:1, 0:c1] + ss_ref[24:25, 0:c1]
        w2 = pk_ref[off["w2"]:off["w2"] + c1, 0:c2]
        b2 = pk_ref[off["b2"]:off["b2"] + 1, 0:c2]
        return _leaky_relu(jnp.dot(h1, w2, preferred_element_type=jnp.float32) + b2)

    @pl.when(p == 1)
    def _pass1():
        a2 = layer2(a1)
        accumulate(a2, H2)
        finalize(1, H2)

    @pl.when(p == 2)
    def _pass2():
        a2 = layer2(a1)
        h2 = a2 * ss_ref[8:9, 0:c2] + ss_ref[32:33, 0:c2]
        w3 = pk_ref[off["w3"]:off["w3"] + c2, 0:c3]
        b3 = pk_ref[off["b3"]:off["b3"] + 1, 0:c3]
        a3 = _leaky_relu(jnp.dot(h2, w3, preferred_element_type=jnp.float32) + b3)
        accumulate(a3, H3)
        finalize(2, H3)


# ----------------------------------------------------------------------------
# Call B: apply pass with frozen scale/shift.  Batch tiles are independent ->
# "parallel" axis (megacore), pipelined lane-packed blocks, lane-dense output.
# ----------------------------------------------------------------------------
def _apply_kernel(num_params, apply_f, off, y_ref, pk_ref, ss_ref, o_ref):
    cP = G * num_params
    c1, c2, c3 = G * H1, G * H2, G * H3
    cn = o_ref.shape[-1]                       # = G * n_out

    y = y_ref[...]
    w1 = pk_ref[off["w1"]:off["w1"] + cP, 0:c1]
    b1 = pk_ref[off["b1"]:off["b1"] + 1, 0:c1]
    h = _leaky_relu(jnp.dot(y, w1, preferred_element_type=jnp.float32) + b1)
    h = h * ss_ref[0:1, 0:c1] + ss_ref[24:25, 0:c1]

    w2 = pk_ref[off["w2"]:off["w2"] + c1, 0:c2]
    b2 = pk_ref[off["b2"]:off["b2"] + 1, 0:c2]
    h = _leaky_relu(jnp.dot(h, w2, preferred_element_type=jnp.float32) + b2)
    h = h * ss_ref[8:9, 0:c2] + ss_ref[32:33, 0:c2]

    w3 = pk_ref[off["w3"]:off["w3"] + c2, 0:c3]
    b3 = pk_ref[off["b3"]:off["b3"] + 1, 0:c3]
    h = _leaky_relu(jnp.dot(h, w3, preferred_element_type=jnp.float32) + b3)
    h = h * ss_ref[16:17, 0:c3] + ss_ref[40:41, 0:c3]

    w4 = pk_ref[off["w4"]:off["w4"] + c3, 0:cn]
    b4 = pk_ref[off["b4"]:off["b4"] + 1, 0:cn]
    out = jnp.dot(h, w4, preferred_element_type=jnp.float32) + b4
    if apply_f:
        out = _leaky_relu(out)
    o_ref[...] = out.astype(o_ref.dtype)


# ----------------------------------------------------------------------------
# Wrapper
# ----------------------------------------------------------------------------
def dffn_forward(y, params, apply_f=False, tile_b=None):
    """Forward pass.  tile_b (optional) is the batch-row tile size; by default
    the largest tile fitting the detected VMEM budget is used."""
    y = jnp.asarray(y, jnp.float32)
    batch, num_params = y.shape
    n_out = params["w4"].shape[1]

    pk, off, rows, lane = pack_params(params, num_params, n_out)
    lane_ss = _round_up(max(G * H1, G * H2, G * H3), 128)

    cap = _vmem_capacity_bytes()
    per_row = _per_row_bytes(num_params, n_out)
    fixed = _fixed_bytes(rows, lane, lane_ss)

    budget = int(cap * 0.75) - fixed - (4 << 20)
    tbp_budget = max(8, min(8192, (budget // per_row) // 8 * 8))
    if tile_b is not None:
        tbp_max = max(8, min(tbp_budget, (int(tile_b) // G) // 8 * 8))
    else:
        tbp_max = tbp_budget

    packed_needed = _cdiv(batch, G)
    num_tiles = _cdiv(packed_needed, tbp_max)
    tbp = _round_up(_cdiv(packed_needed, num_tiles), 8)    # packed rows / tile
    padded_packed = num_tiles * tbp
    padded_batch = padded_packed * G

    if padded_batch != batch:
        y_pad = jnp.zeros((padded_batch, num_params), jnp.float32).at[:batch, :].set(y)
    else:
        y_pad = y
    # Row->lane packing: G consecutive batch rows share one packed row.
    y_in = y_pad.reshape(padded_packed, G * num_params)

    vmem_limit = int(min(int(cap * 0.75),
                         max(16 << 20, fixed + per_row * tbp + (4 << 20))))

    # --- Call A: full-batch BN statistics -> folded (scale, shift). ---
    ss = pl.pallas_call(
        functools.partial(_stats_kernel, num_params, batch, padded_batch, tbp, off),
        out_shape=jax.ShapeDtypeStruct((48, lane_ss), jnp.float32),
        grid=(3, num_tiles),
        in_specs=[
            pl.BlockSpec((tbp, G * num_params), lambda p, i: (i, 0)),
            pl.BlockSpec((rows, lane), lambda p, i: (0, 0)),
        ],
        out_specs=pl.BlockSpec((48, lane_ss), lambda p, i: (0, 0)),
        scratch_shapes=[pltpu.VMEM((16, lane_ss), jnp.float32)],
        compiler_params=pltpu.CompilerParams(
            dimension_semantics=("arbitrary", "arbitrary"),
            vmem_limit_bytes=vmem_limit),
    )(y_in, pk)

    # --- Call B: apply the network with frozen BN scale/shift. ---
    out = pl.pallas_call(
        functools.partial(_apply_kernel, num_params, bool(apply_f), off),
        out_shape=jax.ShapeDtypeStruct((padded_packed, G * n_out), jnp.float32),
        grid=(num_tiles,),
        in_specs=[
            pl.BlockSpec((tbp, G * num_params), lambda i: (i, 0)),
            pl.BlockSpec((rows, lane), lambda i: (0, 0)),
            pl.BlockSpec((48, lane_ss), lambda i: (0, 0)),
        ],
        out_specs=pl.BlockSpec((tbp, G * n_out), lambda i: (i, 0)),
        compiler_params=pltpu.CompilerParams(
            dimension_semantics=("parallel",),
            vmem_limit_bytes=vmem_limit),
    )(y_in, pk, ss)

    out = out.reshape(padded_batch, n_out)
    return out[:batch] if padded_batch != batch else out


# ----------------------------------------------------------------------------
# Init mimicking PyTorch defaults + pure-JAX reference
# ----------------------------------------------------------------------------
def init_params(key, num_params, encoded_dimension):
    dims = [(num_params, H1), (H1, H2), (H2, H3), (H3, encoded_dimension)]
    params = {}
    keys = jax.random.split(key, 2 * len(dims))
    for i, (fan_in, fan_out) in enumerate(dims):
        bound = 1.0 / jnp.sqrt(jnp.float32(fan_in))
        params[f"w{i + 1}"] = jax.random.uniform(
            keys[2 * i], (fan_in, fan_out), minval=-bound, maxval=bound,
            dtype=jnp.float32)
        params[f"b{i + 1}"] = jax.random.uniform(
            keys[2 * i + 1], (1, fan_out), minval=-bound, maxval=bound,
            dtype=jnp.float32)
    for i, d in enumerate([H1, H2, H3], start=1):
        params[f"g{i}"] = jnp.ones((1, d), dtype=jnp.float32)
        params[f"be{i}"] = jnp.zeros((1, d), dtype=jnp.float32)
    return params


def dffn_reference(y, params, apply_f=False):
    def bn(x, g, b):
        mean = jnp.mean(x, axis=0, keepdims=True)
        var = jnp.mean((x - mean) ** 2, axis=0, keepdims=True)
        return (x - mean) / jnp.sqrt(var + BN_EPS) * g + b

    h = y @ params["w1"] + params["b1"]
    h = bn(_leaky_relu(h), params["g1"], params["be1"])
    h = h @ params["w2"] + params["b2"]
    h = bn(_leaky_relu(h), params["g2"], params["be2"])
    h = h @ params["w3"] + params["b3"]
    h = bn(_leaky_relu(h), params["g3"], params["be3"])
    out = h @ params["w4"] + params["b4"]
    if apply_f:
        out = _leaky_relu(out)
    return out


if __name__ == "__main__":
    key = jax.random.PRNGKey(0)
    k_param, k_data, k_data2, k_data3 = jax.random.split(key, 4)

    batch = 8
    num_params = 4           # in_features of the first Linear
    encoded_dimension = 16   # out_features of the last Linear

    params = init_params(k_param, num_params, encoded_dimension)
    y = jax.random.normal(k_data, (batch, num_params), dtype=jnp.float32)

    # apply_f=False path (single tile, exercises the last-tile mask: batch=8 is
    # padded to one 8x(G*P) packed tile = 64 padded batch rows).
    out = jax.block_until_ready(dffn_forward(y, params, apply_f=False))
    ref = dffn_reference(y, params, apply_f=False)
    assert out.shape == (batch, encoded_dimension)
    assert jnp.allclose(out, ref, atol=1e-4, rtol=1e-4), \
        float(jnp.max(jnp.abs(out - ref)))

    # apply_f=True path (final LeakyReLU)
    out_f = jax.block_until_ready(dffn_forward(y, params, apply_f=True))
    ref_f = dffn_reference(y, params, apply_f=True)
    assert jnp.allclose(out_f, ref_f, atol=1e-4, rtol=1e-4), \
        float(jnp.max(jnp.abs(out_f - ref_f)))

    # Multi-tile + remainder masking: batch=200, 64-row tiles -> 4 tiles of 8
    # packed rows, cross-tile BN statistics, masked last tile.
    batch2 = 200
    y2 = jax.random.normal(k_data2, (batch2, num_params), dtype=jnp.float32)
    out2 = jax.block_until_ready(dffn_forward(y2, params, apply_f=False, tile_b=64))
    ref2 = dffn_reference(y2, params, apply_f=False)
    assert out2.shape == (batch2, encoded_dimension)
    assert jnp.allclose(out2, ref2, atol=1e-4, rtol=1e-4), \
        float(jnp.max(jnp.abs(out2 - ref2)))

    # Multi-tile, no padding: batch=1024, 256-row tiles -> 4 tiles, unmasked path.
    batch3 = 1024
    y3 = jax.random.normal(k_data3, (batch3, num_params), dtype=jnp.float32)
    out3 = jax.block_until_ready(dffn_forward(y3, params, apply_f=False, tile_b=256))
    ref3 = dffn_reference(y3, params, apply_f=False)
    assert out3.shape == (batch3, encoded_dimension)
    assert jnp.allclose(out3, ref3, atol=1e-4, rtol=1e-4), \
        float(jnp.max(jnp.abs(out3 - ref3)))

    print("KERNEL_OK")
</pallas_src>

<mosaic_0001>
module attributes {stable_mosaic.version = 11 : i64} {
  func.func @_stats_kernel(%arg0: i32, %arg1: i32, %arg2: memref<8x32xf32, #tpu.memory_space<vmem>>, %arg3: memref<592x384xf32, #tpu.memory_space<vmem>>, %arg4: memref<48x384xf32, #tpu.memory_space<vmem>>, %arg5: memref<16x384xf32, #tpu.memory_space<vmem>>) attributes {dimension_semantics = [#tpu.dimension_semantics<arbitrary>, #tpu.dimension_semantics<arbitrary>], iteration_bounds = array<i64: 3, 1>, scalar_prefetch = 0 : i64, scratch_operands = 1 : i64, tpu.core_type = #tpu.core_type<tc>, window_params = [{transform_indices = @transform_0, window_bounds = array<i64: 8, 32>}, {pipeline_mode = #tpu.pipeline_mode<synchronous>, transform_indices = @transform_1, window_bounds = array<i64: 592, 384>}, {pipeline_mode = #tpu.pipeline_mode<synchronous>, transform_indices = @transform_2, window_bounds = array<i64: 48, 384>}]} {
    %c0_i32 = arith.constant 0 : i32
    %0 = arith.cmpi eq, %arg0, %c0_i32 : i32
    %c0_i32_0 = arith.constant 0 : i32
    %1 = arith.cmpi eq, %arg1, %c0_i32_0 : i32
    %2 = arith.andi %0, %1 : i1
    %3 = arith.extui %2 : i1 to i32
    %c0_i32_1 = arith.constant 0 : i32
    %4 = arith.cmpi ne, %3, %c0_i32_1 : i32
    scf.if %4 {
      %cst_11 = arith.constant 0.000000e+00 : f32
      %23 = vector.broadcast %cst_11 : f32 to vector<48x384xf32>
      %c0_12 = arith.constant 0 : index
      %c0_13 = arith.constant 0 : index
      %24 = vector.load %arg4[%c0_12, %c0_13] : memref<48x384xf32, #tpu.memory_space<vmem>>, vector<48x384xf32>
      tpu.vector_store %arg4[%c0_12, %c0_13], %23 {strides = array<i32>} : memref<48x384xf32, #tpu.memory_space<vmem>>, vector<48x384xf32>,
    } else {
    }
    %c0 = arith.constant 0 : index
    %c0_2 = arith.constant 0 : index
    %5 = vector.load %arg2[%c0, %c0_2] : memref<8x32xf32, #tpu.memory_space<vmem>>, vector<8x32xf32>
    %c0_3 = arith.constant 0 : index
    %c0_4 = arith.constant 0 : index
    %6 = vector.load %arg3[%c0_3, %c0_4] : memref<592x384xf32, #tpu.memory_space<vmem>>, vector<32x96xf32>
    %c32 = arith.constant 32 : index
    %c0_5 = arith.constant 0 : index
    %7 = vector.load %arg3[%c32, %c0_5] : memref<592x384xf32, #tpu.memory_space<vmem>>, vector<1x96xf32>
    %cst = arith.constant dense<0.000000e+00> : vector<8x96xf32>
    %8 = tpu.matmul %5, %6, %cst {dimension_numbers = #tpu.dot_dimension_numbers<[1], [0], [0], [1], [0, 0, 1, 1], [], []>} : vector<8x32xf32>, vector<32x96xf32>, vector<8x96xf32> -> vector<8x96xf32>
    %9 = vector.broadcast %7 : vector<1x96xf32> to vector<8x96xf32>
    %10 = arith.addf %8, %9 : vector<8x96xf32>
    %cst_6 = arith.constant 0.00999999977 : f32
    %11 = vector.broadcast %cst_6 : f32 to vector<8x96xf32>
    %12 = arith.mulf %11, %10 : vector<8x96xf32>
    %13 = arith.maximumf %10, %12 : vector<8x96xf32>
    %c0_i32_7 = arith.constant 0 : i32
    %14 = arith.cmpi eq, %arg0, %c0_i32_7 : i32
    %15 = arith.extui %14 : i1 to i32
    %c0_i32_8 = arith.constant 0 : i32
    %16 = arith.cmpi ne, %15, %c0_i32_8 : i32
    scf.if %16 {
      %c0_i32_11 = arith.constant 0 : i32
      %23 = arith.cmpi eq, %arg1, %c0_i32_11 : i32
      %24 = arith.extui %23 : i1 to i32
      %c0_i32_12 = arith.constant 0 : i32
      %25 = arith.cmpi ne, %24, %c0_i32_12 : i32
      scf.if %25 {
        %cst_21 = arith.constant 0.000000e+00 : f32
        %37 = vector.broadcast %cst_21 : f32 to vector<16x384xf32>
        %c0_22 = arith.constant 0 : index
        %c0_23 = arith.constant 0 : index
        %38 = vector.load %arg5[%c0_22, %c0_23] : memref<16x384xf32, #tpu.memory_space<vmem>>, vector<16x384xf32>
        tpu.vector_store %arg5[%c0_22, %c0_23], %37 {strides = array<i32>} : memref<16x384xf32, #tpu.memory_space<vmem>>, vector<16x384xf32>,
      } else {
      }
      %c0_i32_13 = arith.constant 0 : i32
      %26 = arith.cmpi eq, %arg1, %c0_i32_13 : i32
      %27 = arith.extui %26 : i1 to i32
      %c0_i32_14 = arith.constant 0 : i32
      %28 = arith.cmpi ne, %27, %c0_i32_14 : i32
      scf.if %28 {
        %37 = tpu.iota {dimensions = array<i32: 1>} : vector<8x96xi32>
        %c0_i32_21 = arith.constant 0 : i32
        %38 = vector.broadcast %c0_i32_21 : i32 to vector<8x96xi32>
        %c12_i32 = arith.constant 12 : i32
        %39 = vector.broadcast %c12_i32 : i32 to vector<8x96xi32>
        %40 = arith.cmpi sge, %37, %39 : vector<8x96xi32>
        %41 = arith.extui %40 : vector<8x96xi1> to vector<8x96xi32>
        %42 = arith.addi %38, %41 : vector<8x96xi32>
        %c24_i32 = arith.constant 24 : i32
        %43 = vector.broadcast %c24_i32 : i32 to vector<8x96xi32>
        %44 = arith.cmpi sge, %37, %43 : vector<8x96xi32>
        %45 = arith.extui %44 : vector<8x96xi1> to vector<8x96xi32>
        %46 = arith.addi %42, %45 : vector<8x96xi32>
        %c36_i32 = arith.constant 36 : i32
        %47 = vector.broadcast %c36_i32 : i32 to vector<8x96xi32>
        %48 = arith.cmpi sge, %37, %47 : vector<8x96xi32>
        %49 = arith.extui %48 : vector<8x96xi1> to vector<8x96xi32>
        %50 = arith.addi %46, %49 : vector<8x96xi32>
        %c48_i32 = arith.constant 48 : i32
        %51 = vector.broadcast %c48_i32 : i32 to vector<8x96xi32>
        %52 = arith.cmpi sge, %37, %51 : vector<8x96xi32>
        %53 = arith.extui %52 : vector<8x96xi1> to vector<8x96xi32>
        %54 = arith.addi %50, %53 : vector<8x96xi32>
        %c60_i32 = arith.constant 60 : i32
        %55 = vector.broadcast %c60_i32 : i32 to vector<8x96xi32>
        %56 = arith.cmpi sge, %37, %55 : vector<8x96xi32>
        %57 = arith.extui %56 : vector<8x96xi1> to vector<8x96xi32>
        %58 = arith.addi %54, %57 : vector<8x96xi32>
        %c72_i32 = arith.constant 72 : i32
        %59 = vector.broadcast %c72_i32 : i32 to vector<8x96xi32>
        %60 = arith.cmpi sge, %37, %59 : vector<8x96xi32>
        %61 = arith.extui %60 : vector<8x96xi1> to vector<8x96xi32>
        %62 = arith.addi %58, %61 : vector<8x96xi32>
        %c84_i32 = arith.constant 84 : i32
        %63 = vector.broadcast %c84_i32 : i32 to vector<8x96xi32>
        %64 = arith.cmpi sge, %37, %63 : vector<8x96xi32>
        %65 = arith.extui %64 : vector<8x96xi1> to vector<8x96xi32>
        %66 = arith.addi %62, %65 : vector<8x96xi32>
        %67 = tpu.iota {dimensions = array<i32: 0>} : vector<8x96xi32>
        %c8_i32 = arith.constant 8 : i32
        %68 = arith.muli %arg1, %c8_i32 : i32
        %69 = vector.broadcast %68 : i32 to vector<8x96xi32>
        %70 = arith.addi %69, %67 : vector<8x96xi32>
        %c8_i32_22 = arith.constant 8 : i32
        %71 = vector.broadcast %c8_i32_22 : i32 to vector<8x96xi32>
        %72 = arith.muli %70, %71 : vector<8x96xi32>
        %73 = arith.addi %72, %66 : vector<8x96xi32>
        %c8_i32_23 = arith.constant 8 : i32
        %74 = vector.broadcast %c8_i32_23 : i32 to vector<8x96xi32>
        %75 = arith.cmpi slt, %73, %74 : vector<8x96xi32>
        %cst_24 = arith.constant 0.000000e+00 : f32
        %76 = vector.broadcast %cst_24 : f32 to vector<8x96xf32>
        %77 = arith.select %75, %13, %76 : vector<8x96xi1>, vector<8x96xf32>
        %c0_25 = arith.constant 0 : index
        %c0_26 = arith.constant 0 : index
        %78 = vector.load %arg5[%c0_25, %c0_26] : memref<16x384xf32, #tpu.memory_space<vmem>>, vector<1x96xf32>
        %cst_27 = arith.constant dense<0.000000e+00> : vector<96xf32>
        %79 = vector.multi_reduction <add>, %77, %cst_27 [0] : vector<8x96xf32> to vector<96xf32>
        %80 = vector.shape_cast %79 : vector<96xf32> to vector<1x96xf32>
        %81 = arith.addf %78, %80 : vector<1x96xf32>
        %c0_28 = arith.constant 0 : index
        %c0_29 = arith.constant 0 : index
        %82 = vector.load %arg5[%c0_28, %c0_29] : memref<16x384xf32, #tpu.memory_space<vmem>>, vector<1x96xf32>
        tpu.vector_store %arg5[%c0_28, %c0_29], %81 {strides = array<i32>} : memref<16x384xf32, #tpu.memory_space<vmem>>, vector<1x96xf32>,
        %c8 = arith.constant 8 : index
        %c0_30 = arith.constant 0 : index
        %83 = vector.load %arg5[%c8, %c0_30] : memref<16x384xf32, #tpu.memory_space<vmem>>, vector<1x96xf32>
        %84 = arith.mulf %77, %77 : vector<8x96xf32>
        %cst_31 = arith.constant dense<0.000000e+00> : vector<96xf32>
        %85 = vector.multi_reduction <add>, %84, %cst_31 [0] : vector<8x96xf32> to vector<96xf32>
        %86 = vector.shape_cast %85 : vector<96xf32> to vector<1x96xf32>
        %87 = arith.addf %83, %86 : vector<1x96xf32>
        %c8_32 = arith.constant 8 : index
        %c0_33 = arith.constant 0 : index
        %88 = vector.load %arg5[%c8_32, %c0_33] : memref<16x384xf32, #tpu.memory_space<vmem>>, vector<1x96xf32>
        tpu.vector_store %arg5[%c8_32, %c0_33], %87 {strides = array<i32>} : memref<16x384xf32, #tpu.memory_space<vmem>>, vector<1x96xf32>,
      } else {
      }
      %c0_i32_15 = arith.constant 0 : i32
      %29 = arith.cmpi ne, %arg1, %c0_i32_15 : i32
      %30 = arith.extui %29 : i1 to i32
      %c0_i32_16 = arith.constant 0 : i32
      %31 = arith.cmpi ne, %30, %c0_i32_16 : i32
      scf.if %31 {
        %c0_21 = arith.constant 0 : index
        %c0_22 = arith.constant 0 : index
        %37 = vector.load %arg5[%c0_21, %c0_22] : memref<16x384xf32, #tpu.memory_space<vmem>>, vector<1x96xf32>
        %cst_23 = arith.constant dense<0.000000e+00> : vector<96xf32>
        %38 = vector.multi_reduction <add>, %13, %cst_23 [0] : vector<8x96xf32> to vector<96xf32>
        %39 = vector.shape_cast %38 : vector<96xf32> to vector<1x96xf32>
        %40 = arith.addf %37, %39 : vector<1x96xf32>
        %c0_24 = arith.constant 0 : index
        %c0_25 = arith.constant 0 : index
        %41 = vector.load %arg5[%c0_24, %c0_25] : memref<16x384xf32, #tpu.memory_space<vmem>>, vector<1x96xf32>
        tpu.vector_store %arg5[%c0_24, %c0_25], %40 {strides = array<i32>} : memref<16x384xf32, #tpu.memory_space<vmem>>, vector<1x96xf32>,
        %c8 = arith.constant 8 : index
        %c0_26 = arith.constant 0 : index
        %42 = vector.load %arg5[%c8, %c0_26] : memref<16x384xf32, #tpu.memory_space<vmem>>, vector<1x96xf32>
        %43 = arith.mulf %13, %13 : vector<8x96xf32>
        %cst_27 = arith.constant dense<0.000000e+00> : vector<96xf32>
        %44 = vector.multi_reduction <add>, %43, %cst_27 [0] : vector<8x96xf32> to vector<96xf32>
        %45 = vector.shape_cast %44 : vector<96xf32> to vector<1x96xf32>
        %46 = arith.addf %42, %45 : vector<1x96xf32>
        %c8_28 = arith.constant 8 : index
        %c0_29 = arith.constant 0 : index
        %47 = vector.load %arg5[%c8_28, %c0_29] : memref<16x384xf32, #tpu.memory_space<vmem>>, vector<1x96xf32>
        tpu.vector_store %arg5[%c8_28, %c0_29], %46 {strides = array<i32>} : memref<16x384xf32, #tpu.memory_space<vmem>>, vector<1x96xf32>,
      } else {
      }
      %c40 = arith.constant 40 : index
      %c0_17 = arith.constant 0 : index
      %32 = vector.load %arg3[%c40, %c0_17] : memref<592x384xf32, #tpu.memory_space<vmem>>, vector<1x96xf32>
      %c48 = arith.constant 48 : index
      %c0_18 = arith.constant 0 : index
      %33 = vector.load %arg3[%c48, %c0_18] : memref<592x384xf32, #tpu.memory_space<vmem>>, vector<1x96xf32>
      %c0_i32_19 = arith.constant 0 : i32
      %34 = arith.cmpi eq, %arg1, %c0_i32_19 : i32
      %35 = arith.extui %34 : i1 to i32
      %c0_i32_20 = arith.constant 0 : i32
      %36 = arith.cmpi ne, %35, %c0_i32_20 : i32
      scf.if %36 {
        %c0_21 = arith.constant 0 : index
        %c0_22 = arith.constant 0 : index
        %37 = vector.load %arg5[%c0_21, %c0_22] : memref<16x384xf32, #tpu.memory_space<vmem>>, vector<1x96xf32>
        %c8 = arith.constant 8 : index
        %c0_23 = arith.constant 0 : index
        %38 = vector.load %arg5[%c8, %c0_23] : memref<16x384xf32, #tpu.memory_space<vmem>>, vector<1x96xf32>
        %39 = vector.extract_strided_slice %37 {offsets = [0, 0], sizes = [1, 12], strides = [1, 1]} : vector<1x96xf32> to vector<1x12xf32>
        %40 = vector.extract_strided_slice %38 {offsets = [0, 0], sizes = [1, 12], strides = [1, 1]} : vector<1x96xf32> to vector<1x12xf32>
        %41 = vector.extract_strided_slice %37 {offsets = [0, 12], sizes = [1, 12], strides = [1, 1]} : vector<1x96xf32> to vector<1x12xf32>
        %42 = arith.addf %39, %41 : vector<1x12xf32>
        %43 = vector.extract_strided_slice %38 {offsets = [0, 12], sizes = [1, 12], strides = [1, 1]} : vector<1x96xf32> to vector<1x12xf32>
        %44 = arith.addf %40, %43 : vector<1x12xf32>
        %45 = vector.extract_strided_slice %37 {offsets = [0, 24], sizes = [1, 12], strides = [1, 1]} : vector<1x96xf32> to vector<1x12xf32>
        %46 = arith.addf %42, %45 : vector<1x12xf32>
        %47 = vector.extract_strided_slice %38 {offsets = [0, 24], sizes = [1, 12], strides = [1, 1]} : vector<1x96xf32> to vector<1x12xf32>
        %48 = arith.addf %44, %47 : vector<1x12xf32>
        %49 = vector.extract_strided_slice %37 {offsets = [0, 36], sizes = [1, 12], strides = [1, 1]} : vector<1x96xf32> to vector<1x12xf32>
        %50 = arith.addf %46, %49 : vector<1x12xf32>
        %51 = vector.extract_strided_slice %38 {offsets = [0, 36], sizes = [1, 12], strides = [1, 1]} : vector<1x96xf32> to vector<1x12xf32>
        %52 = arith.addf %48, %51 : vector<1x12xf32>
        %53 = vector.extract_strided_slice %37 {offsets = [0, 48], sizes = [1, 12], strides = [1, 1]} : vector<1x96xf32> to vector<1x12xf32>
        %54 = arith.addf %50, %53 : vector<1x12xf32>
        %55 = vector.extract_strided_slice %38 {offsets = [0, 48], sizes = [1, 12], strides = [1, 1]} : vector<1x96xf32> to vector<1x12xf32>
        %56 = arith.addf %52, %55 : vector<1x12xf32>
        %57 = vector.extract_strided_slice %37 {offsets = [0, 60], sizes = [1, 12], strides = [1, 1]} : vector<1x96xf32> to vector<1x12xf32>
        %58 = arith.addf %54, %57 : vector<1x12xf32>
        %59 = vector.extract_strided_slice %38 {offsets = [0, 60], sizes = [1, 12], strides = [1, 1]} : vector<1x96xf32> to vector<1x12xf32>
        %60 = arith.addf %56, %59 : vector<1x12xf32>
        %61 = vector.extract_strided_slice %37 {offsets = [0, 72], sizes = [1, 12], strides = [1, 1]} : vector<1x96xf32> to vector<1x12xf32>
        %62 = arith.addf %58, %61 : vector<1x12xf32>
        %63 = vector.extract_strided_slice %38 {offsets = [0, 72], sizes = [1, 12], strides = [1, 1]} : vector<1x96xf32> to vector<1x12xf32>
        %64 = arith.addf %60, %63 : vector<1x12xf32>
        %65 = vector.extract_strided_slice %37 {offsets = [0, 84], sizes = [1, 12], strides = [1, 1]} : vector<1x96xf32> to vector<1x12xf32>
        %66 = arith.addf %62, %65 : vector<1x12xf32>
        %67 = vector.extract_strided_slice %38 {offsets = [0, 84], sizes = [1, 12], strides = [1, 1]} : vector<1x96xf32> to vector<1x12xf32>
        %68 = arith.addf %64, %67 : vector<1x12xf32>
        %cst_24 = arith.constant 1.250000e-01 : f32
        %69 = vector.broadcast %cst_24 : f32 to vector<1x12xf32>
        %70 = arith.mulf %66, %69 : vector<1x12xf32>
        %cst_25 = arith.constant 1.250000e-01 : f32
        %71 = vector.broadcast %cst_25 : f32 to vector<1x12xf32>
        %72 = arith.mulf %68, %71 : vector<1x12xf32>
        %73 = arith.mulf %70, %70 : vector<1x12xf32>
        %74 = arith.subf %72, %73 : vector<1x12xf32>
        %cst_26 = arith.constant 0.000000e+00 : f32
        %75 = vector.broadcast %cst_26 : f32 to vector<1x12xf32>
        %76 = arith.maximumf %74, %75 : vector<1x12xf32>
        %cst_27 = arith.constant 9.99999974E-6 : f32
        %77 = vector.broadcast %cst_27 : f32 to vector<1x12xf32>
        %78 = arith.addf %76, %77 : vector<1x12xf32>
        %79 = math.rsqrt %78 : vector<1x12xf32>
        %80 = tpu.concatenate %79, %79, %79, %79, %79, %79, %79, %79 in 1 : vector<1x12xf32>, vector<1x12xf32>, vector<1x12xf32>, vector<1x12xf32>, vector<1x12xf32>, vector<1x12xf32>, vector<1x12xf32>, vector<1x12xf32> -> vector<1x96xf32>
        %81 = arith.mulf %80, %32 : vector<1x96xf32>
        %82 = tpu.concatenate %70, %70, %70, %70, %70, %70, %70, %70 in 1 : vector<1x12xf32>, vector<1x12xf32>, vector<1x12xf32>, vector<1x12xf32>, vector<1x12xf32>, vector<1x12xf32>, vector<1x12xf32>, vector<1x12xf32> -> vector<1x96xf32>
        %83 = arith.mulf %82, %81 : vector<1x96xf32>
        %84 = arith.subf %33, %83 : vector<1x96xf32>
        %c0_28 = arith.constant 0 : index
        %c0_29 = arith.constant 0 : index
        %85 = vector.load %arg4[%c0_28, %c0_29] : memref<48x384xf32, #tpu.memory_space<vmem>>, vector<1x96xf32>
        tpu.vector_store %arg4[%c0_28, %c0_29], %81 {strides = array<i32>} : memref<48x384xf32, #tpu.memory_space<vmem>>, vector<1x96xf32>,
        %c24 = arith.constant 24 : index
        %c0_30 = arith.constant 0 : index
        %86 = vector.load %arg4[%c24, %c0_30] : memref<48x384xf32, #tpu.memory_space<vmem>>, vector<1x96xf32>
        tpu.vector_store %arg4[%c24, %c0_30], %84 {strides = array<i32>} : memref<48x384xf32, #tpu.memory_space<vmem>>, vector<1x96xf32>,
      } else {
      }
    } else {
    }
    %c1_i32 = arith.constant 1 : i32
    %17 = arith.cmpi eq, %arg0, %c1_i32 : i32
    %18 = arith.extui %17 : i1 to i32
    %c0_i32_9 = arith.constant 0 : i32
    %19 = arith.cmpi ne, %18, %c0_i32_9 : i32
    scf.if %19 {
      %c0_11 = arith.constant 0 : index
      %c0_12 = arith.constant 0 : index
      %23 = vector.load %arg4[%c0_11, %c0_12] : memref<48x384xf32, #tpu.memory_space<vmem>>, vector<1x96xf32>
      %24 = vector.broadcast %23 : vector<1x96xf32> to vector<8x96xf32>
      %25 = arith.mulf %13, %24 : vector<8x96xf32>
      %c24 = arith.constant 24 : index
      %c0_13 = arith.constant 0 : index
      %26 = vector.load %arg4[%c24, %c0_13] : memref<48x384xf32, #tpu.memory_space<vmem>>, vector<1x96xf32>
      %27 = vector.broadcast %26 : vector<1x96xf32> to vector<8x96xf32>
      %28 = arith.addf %25, %27 : vector<8x96xf32>
      %c56 = arith.constant 56 : index
      %c0_14 = arith.constant 0 : index
      %29 = vector.load %arg3[%c56, %c0_14] : memref<592x384xf32, #tpu.memory_space<vmem>>, vector<96x288xf32>
      %c152 = arith.constant 152 : index
      %c0_15 = arith.constant 0 : index
      %30 = vector.load %arg3[%c152, %c0_15] : memref<592x384xf32, #tpu.memory_space<vmem>>, vector<1x288xf32>
      %cst_16 = arith.constant dense<0.000000e+00> : vector<8x288xf32>
      %31 = tpu.matmul %28, %29, %cst_16 {dimension_numbers = #tpu.dot_dimension_numbers<[1], [0], [0], [1], [0, 0, 1, 1], [], []>} : vector<8x96xf32>, vector<96x288xf32>, vector<8x288xf32> -> vector<8x288xf32>
      %32 = vector.broadcast %30 : vector<1x288xf32> to vector<8x288xf32>
      %33 = arith.addf %31, %32 : vector<8x288xf32>
      %cst_17 = arith.constant 0.00999999977 : f32
      %34 = vector.broadcast %cst_17 : f32 to vector<8x288xf32>
      %35 = arith.mulf %34, %33 : vector<8x288xf32>
      %36 = arith.maximumf %33, %35 : vector<8x288xf32>
      %c0_i32_18 = arith.constant 0 : i32
      %37 = arith.cmpi eq, %arg1, %c0_i32_18 : i32
      %38 = arith.extui %37 : i1 to i32
      %c0_i32_19 = arith.constant 0 : i32
      %39 = arith.cmpi ne, %38, %c0_i32_19 : i32
      scf.if %39 {
        %cst_28 = arith.constant 0.000000e+00 : f32
        %51 = vector.broadcast %cst_28 : f32 to vector<16x384xf32>
        %c0_29 = arith.constant 0 : index
        %c0_30 = arith.constant 0 : index
        %52 = vector.load %arg5[%c0_29, %c0_30] : memref<16x384xf32, #tpu.memory_space<vmem>>, vector<16x384xf32>
        tpu.vector_store %arg5[%c0_29, %c0_30], %51 {strides = array<i32>} : memref<16x384xf32, #tpu.memory_space<vmem>>, vector<16x384xf32>,
      } else {
      }
      %c0_i32_20 = arith.constant 0 : i32
      %40 = arith.cmpi eq, %arg1, %c0_i32_20 : i32
      %41 = arith.extui %40 : i1 to i32
      %c0_i32_21 = arith.constant 0 : i32
      %42 = arith.cmpi ne, %41, %c0_i32_21 : i32
      scf.if %42 {
        %51 = tpu.iota {dimensions = array<i32: 1>} : vector<8x288xi32>
        %c0_i32_28 = arith.constant 0 : i32
        %52 = vector.broadcast %c0_i32_28 : i32 to vector<8x288xi32>
        %c36_i32 = arith.constant 36 : i32
        %53 = vector.broadcast %c36_i32 : i32 to vector<8x288xi32>
        %54 = arith.cmpi sge, %51, %53 : vector<8x288xi32>
        %55 = arith.extui %54 : vector<8x288xi1> to vector<8x288xi32>
        %56 = arith.addi %52, %55 : vector<8x288xi32>
        %c72_i32 = arith.constant 72 : i32
        %57 = vector.broadcast %c72_i32 : i32 to vector<8x288xi32>
        %58 = arith.cmpi sge, %51, %57 : vector<8x288xi32>
        %59 = arith.extui %58 : vector<8x288xi1> to vector<8x288xi32>
        %60 = arith.addi %56, %59 : vector<8x288xi32>
        %c108_i32 = arith.constant 108 : i32
        %61 = vector.broadcast %c108_i32 : i32 to vector<8x288xi32>
        %62 = arith.cmpi sge, %51, %61 : vector<8x288xi32>
        %63 = arith.extui %62 : vector<8x288xi1> to vector<8x288xi32>
        %64 = arith.addi %60, %63 : vector<8x288xi32>
        %c144_i32 = arith.constant 144 : i32
        %65 = vector.broadcast %c144_i32 : i32 to vector<8x288xi32>
        %66 = arith.cmpi sge, %51, %65 : vector<8x288xi32>
        %67 = arith.extui %66 : vector<8x288xi1> to vector<8x288xi32>
        %68 = arith.addi %64, %67 : vector<8x288xi32>
        %c180_i32 = arith.constant 180 : i32
        %69 = vector.broadcast %c180_i32 : i32 to vector<8x288xi32>
        %70 = arith.cmpi sge, %51, %69 : vector<8x288xi32>
        %71 = arith.extui %70 : vector<8x288xi1> to vector<8x288xi32>
        %72 = arith.addi %68, %71 : vector<8x288xi32>
        %c216_i32 = arith.constant 216 : i32
        %73 = vector.broadcast %c216_i32 : i32 to vector<8x288xi32>
        %74 = arith.cmpi sge, %51, %73 : vector<8x288xi32>
        %75 = arith.extui %74 : vector<8x288xi1> to vector<8x288xi32>
        %76 = arith.addi %72, %75 : vector<8x288xi32>
        %c252_i32 = arith.constant 252 : i32
        %77 = vector.broadcast %c252_i32 : i32 to vector<8x288xi32>
        %78 = arith.cmpi sge, %51, %77 : vector<8x288xi32>
        %79 = arith.extui %78 : vector<8x288xi1> to vector<8x288xi32>
        %80 = arith.addi %76, %79 : vector<8x288xi32>
        %81 = tpu.iota {dimensions = array<i32: 0>} : vector<8x288xi32>
        %c8_i32 = arith.constant 8 : i32
        %82 = arith.muli %arg1, %c8_i32 : i32
        %83 = vector.broadcast %82 : i32 to vector<8x288xi32>
        %84 = arith.addi %83, %81 : vector<8x288xi32>
        %c8_i32_29 = arith.constant 8 : i32
        %85 = vector.broadcast %c8_i32_29 : i32 to vector<8x288xi32>
        %86 = arith.muli %84, %85 : vector<8x288xi32>
        %87 = arith.addi %86, %80 : vector<8x288xi32>
        %c8_i32_30 = arith.constant 8 : i32
        %88 = vector.broadcast %c8_i32_30 : i32 to vector<8x288xi32>
        %89 = arith.cmpi slt, %87, %88 : vector<8x288xi32>
        %cst_31 = arith.constant 0.000000e+00 : f32
        %90 = vector.broadcast %cst_31 : f32 to vector<8x288xf32>
        %91 = arith.select %89, %36, %90 : vector<8x288xi1>, vector<8x288xf32>
        %c0_32 = arith.constant 0 : index
        %c0_33 = arith.constant 0 : index
        %92 = vector.load %arg5[%c0_32, %c0_33] : memref<16x384xf32, #tpu.memory_space<vmem>>, vector<1x288xf32>
        %cst_34 = arith.constant dense<0.000000e+00> : vector<288xf32>
        %93 = vector.multi_reduction <add>, %91, %cst_34 [0] : vector<8x288xf32> to vector<288xf32>
        %94 = vector.shape_cast %93 : vector<288xf32> to vector<1x288xf32>
        %95 = arith.addf %92, %94 : vector<1x288xf32>
        %c0_35 = arith.constant 0 : index
        %c0_36 = arith.constant 0 : index
        %96 = vector.load %arg5[%c0_35, %c0_36] : memref<16x384xf32, #tpu.memory_space<vmem>>, vector<1x288xf32>
        tpu.vector_store %arg5[%c0_35, %c0_36], %95 {strides = array<i32>} : memref<16x384xf32, #tpu.memory_space<vmem>>, vector<1x288xf32>,
        %c8 = arith.constant 8 : index
        %c0_37 = arith.constant 0 : index
        %97 = vector.load %arg5[%c8, %c0_37] : memref<16x384xf32, #tpu.memory_space<vmem>>, vector<1x288xf32>
        %98 = arith.mulf %91, %91 : vector<8x288xf32>
        %cst_38 = arith.constant dense<0.000000e+00> : vector<288xf32>
        %99 = vector.multi_reduction <add>, %98, %cst_38 [0] : vector<8x288xf32> to vector<288xf32>
        %100 = vector.shape_cast %99 : vector<288xf32> to vector<1x288xf32>
        %101 = arith.addf %97, %100 : vector<1x288xf32>
        %c8_39 = arith.constant 8 : index
        %c0_40 = arith.constant 0 : index
        %102 = vector.load %arg5[%c8_39, %c0_40] : memref<16x384xf32, #tpu.memory_space<vmem>>, vector<1x288xf32>
        tpu.vector_store %arg5[%c8_39, %c0_40], %101 {strides = array<i32>} : memref<16x384xf32, #tpu.memory_space<vmem>>, vector<1x288xf32>,
      } else {
      }
      %c0_i32_22 = arith.constant 0 : i32
      %43 = arith.cmpi ne, %arg1, %c0_i32_22 : i32
      %44 = arith.extui %43 : i1 to i32
      %c0_i32_23 = arith.constant 0 : i32
      %45 = arith.cmpi ne, %44, %c0_i32_23 : i32
      scf.if %45 {
        %c0_28 = arith.constant 0 : index
        %c0_29 = arith.constant 0 : index
        %51 = vector.load %arg5[%c0_28, %c0_29] : memref<16x384xf32, #tpu.memory_space<vmem>>, vector<1x288xf32>
        %cst_30 = arith.constant dense<0.000000e+00> : vector<288xf32>
        %52 = vector.multi_reduction <add>, %36, %cst_30 [0] : vector<8x288xf32> to vector<288xf32>
        %53 = vector.shape_cast %52 : vector<288xf32> to vector<1x288xf32>
        %54 = arith.addf %51, %53 : vector<1x288xf32>
        %c0_31 = arith.constant 0 : index
        %c0_32 = arith.constant 0 : index
        %55 = vector.load %arg5[%c0_31, %c0_32] : memref<16x384xf32, #tpu.memory_space<vmem>>, vector<1x288xf32>
        tpu.vector_store %arg5[%c0_31, %c0_32], %54 {strides = array<i32>} : memref<16x384xf32, #tpu.memory_space<vmem>>, vector<1x288xf32>,
        %c8 = arith.constant 8 : index
        %c0_33 = arith.constant 0 : index
        %56 = vector.load %arg5[%c8, %c0_33] : memref<16x384xf32, #tpu.memory_space<vmem>>, vector<1x288xf32>
        %57 = arith.mulf %36, %36 : vector<8x288xf32>
        %cst_34 = arith.constant dense<0.000000e+00> : vector<288xf32>
        %58 = vector.multi_reduction <add>, %57, %cst_34 [0] : vector<8x288xf32> to vector<288xf32>
        %59 = vector.shape_cast %58 : vector<288xf32> to vector<1x288xf32>
        %60 = arith.addf %56, %59 : vector<1x288xf32>
        %c8_35 = arith.constant 8 : index
        %c0_36 = arith.constant 0 : index
        %61 = vector.load %arg5[%c8_35, %c0_36] : memref<16x384xf32, #tpu.memory_space<vmem>>, vector<1x288xf32>
        tpu.vector_store %arg5[%c8_35, %c0_36], %60 {strides = array<i32>} : memref<16x384xf32, #tpu.memory_space<vmem>>, vector<1x288xf32>,
      } else {
      }
      %c160 = arith.constant 160 : index
      %c0_24 = arith.constant 0 : index
      %46 = vector.load %arg3[%c160, %c0_24] : memref<592x384xf32, #tpu.memory_space<vmem>>, vector<1x288xf32>
      %c168 = arith.constant 168 : index
      %c0_25 = arith.constant 0 : index
      %47 = vector.load %arg3[%c168, %c0_25] : memref<592x384xf32, #tpu.memory_space<vmem>>, vector<1x288xf32>
      %c0_i32_26 = arith.constant 0 : i32
      %48 = arith.cmpi eq, %arg1, %c0_i32_26 : i32
      %49 = arith.extui %48 : i1 to i32
      %c0_i32_27 = arith.constant 0 : i32
      %50 = arith.cmpi ne, %49, %c0_i32_27 : i32
      scf.if %50 {
        %c0_28 = arith.constant 0 : index
        %c0_29 = arith.constant 0 : index
        %51 = vector.load %arg5[%c0_28, %c0_29] : memref<16x384xf32, #tpu.memory_space<vmem>>, vector<1x288xf32>
        %c8 = arith.constant 8 : index
        %c0_30 = arith.constant 0 : index
        %52 = vector.load %arg5[%c8, %c0_30] : memref<16x384xf32, #tpu.memory_space<vmem>>, vector<1x288xf32>
        %53 = vector.extract_strided_slice %51 {offsets = [0, 0], sizes = [1, 36], strides = [1, 1]} : vector<1x288xf32> to vector<1x36xf32>
        %54 = vector.extract_strided_slice %52 {offsets = [0, 0], sizes = [1, 36], strides = [1, 1]} : vector<1x288xf32> to vector<1x36xf32>
        %55 = vector.extract_strided_slice %51 {offsets = [0, 36], sizes = [1, 36], strides = [1, 1]} : vector<1x288xf32> to vector<1x36xf32>
        %56 = arith.addf %53, %55 : vector<1x36xf32>
        %57 = vector.extract_strided_slice %52 {offsets = [0, 36], sizes = [1, 36], strides = [1, 1]} : vector<1x288xf32> to vector<1x36xf32>
        %58 = arith.addf %54, %57 : vector<1x36xf32>
        %59 = vector.extract_strided_slice %51 {offsets = [0, 72], sizes = [1, 36], strides = [1, 1]} : vector<1x288xf32> to vector<1x36xf32>
        %60 = arith.addf %56, %59 : vector<1x36xf32>
        %61 = vector.extract_strided_slice %52 {offsets = [0, 72], sizes = [1, 36], strides = [1, 1]} : vector<1x288xf32> to vector<1x36xf32>
        %62 = arith.addf %58, %61 : vector<1x36xf32>
        %63 = vector.extract_strided_slice %51 {offsets = [0, 108], sizes = [1, 36], strides = [1, 1]} : vector<1x288xf32> to vector<1x36xf32>
        %64 = arith.addf %60, %63 : vector<1x36xf32>
        %65 = vector.extract_strided_slice %52 {offsets = [0, 108], sizes = [1, 36], strides = [1, 1]} : vector<1x288xf32> to vector<1x36xf32>
        %66 = arith.addf %62, %65 : vector<1x36xf32>
        %67 = vector.extract_strided_slice %51 {offsets = [0, 144], sizes = [1, 36], strides = [1, 1]} : vector<1x288xf32> to vector<1x36xf32>
        %68 = arith.addf %64, %67 : vector<1x36xf32>
        %69 = vector.extract_strided_slice %52 {offsets = [0, 144], sizes = [1, 36], strides = [1, 1]} : vector<1x288xf32> to vector<1x36xf32>
        %70 = arith.addf %66, %69 : vector<1x36xf32>
        %71 = vector.extract_strided_slice %51 {offsets = [0, 180], sizes = [1, 36], strides = [1, 1]} : vector<1x288xf32> to vector<1x36xf32>
        %72 = arith.addf %68, %71 : vector<1x36xf32>
        %73 = vector.extract_strided_slice %52 {offsets = [0, 180], sizes = [1, 36], strides = [1, 1]} : vector<1x288xf32> to vector<1x36xf32>
        %74 = arith.addf %70, %73 : vector<1x36xf32>
        %75 = vector.extract_strided_slice %51 {offsets = [0, 216], sizes = [1, 36], strides = [1, 1]} : vector<1x288xf32> to vector<1x36xf32>
        %76 = arith.addf %72, %75 : vector<1x36xf32>
        %77 = vector.extract_strided_slice %52 {offsets = [0, 216], sizes = [1, 36], strides = [1, 1]} : vector<1x288xf32> to vector<1x36xf32>
        %78 = arith.addf %74, %77 : vector<1x36xf32>
        %79 = vector.extract_strided_slice %51 {offsets = [0, 252], sizes = [1, 36], strides = [1, 1]} : vector<1x288xf32> to vector<1x36xf32>
        %80 = arith.addf %76, %79 : vector<1x36xf32>
        %81 = vector.extract_strided_slice %52 {offsets = [0, 252], sizes = [1, 36], strides = [1, 1]} : vector<1x288xf32> to vector<1x36xf32>
        %82 = arith.addf %78, %81 : vector<1x36xf32>
        %cst_31 = arith.constant 1.250000e-01 : f32
        %83 = vector.broadcast %cst_31 : f32 to vector<1x36xf32>
        %84 = arith.mulf %80, %83 : vector<1x36xf32>
        %cst_32 = arith.constant 1.250000e-01 : f32
        %85 = vector.broadcast %cst_32 : f32 to vector<1x36xf32>
        %86 = arith.mulf %82, %85 : vector<1x36xf32>
        %87 = arith.mulf %84, %84 : vector<1x36xf32>
        %88 = arith.subf %86, %87 : vector<1x36xf32>
        %cst_33 = arith.constant 0.000000e+00 : f32
        %89 = vector.broadcast %cst_33 : f32 to vector<1x36xf32>
        %90 = arith.maximumf %88, %89 : vector<1x36xf32>
        %cst_34 = arith.constant 9.99999974E-6 : f32
        %91 = vector.broadcast %cst_34 : f32 to vector<1x36xf32>
        %92 = arith.addf %90, %91 : vector<1x36xf32>
        %93 = math.rsqrt %92 : vector<1x36xf32>
        %94 = tpu.concatenate %93, %93, %93, %93, %93, %93, %93, %93 in 1 : vector<1x36xf32>, vector<1x36xf32>, vector<1x36xf32>, vector<1x36xf32>, vector<1x36xf32>, vector<1x36xf32>, vector<1x36xf32>, vector<1x36xf32> -> vector<1x288xf32>
        %95 = arith.mulf %94, %46 : vector<1x288xf32>
        %96 = tpu.concatenate %84, %84, %84, %84, %84, %84, %84, %84 in 1 : vector<1x36xf32>, vector<1x36xf32>, vector<1x36xf32>, vector<1x36xf32>, vector<1x36xf32>, vector<1x36xf32>, vector<1x36xf32>, vector<1x36xf32> -> vector<1x288xf32>
        %97 = arith.mulf %96, %95 : vector<1x288xf32>
        %98 = arith.subf %47, %97 : vector<1x288xf32>
        %c8_35 = arith.constant 8 : index
        %c0_36 = arith.constant 0 : index
        %99 = vector.load %arg4[%c8_35, %c0_36] : memref<48x384xf32, #tpu.memory_space<vmem>>, vector<1x288xf32>
        tpu.vector_store %arg4[%c8_35, %c0_36], %95 {strides = array<i32>} : memref<48x384xf32, #tpu.memory_space<vmem>>, vector<1x288xf32>,
        %c32_37 = arith.constant 32 : index
        %c0_38 = arith.constant 0 : index
        %100 = vector.load %arg4[%c32_37, %c0_38] : memref<48x384xf32, #tpu.memory_space<vmem>>, vector<1x288xf32>
        tpu.vector_store %arg4[%c32_37, %c0_38], %98 {strides = array<i32>} : memref<48x384xf32, #tpu.memory_space<vmem>>, vector<1x288xf32>,
      } else {
      }
    } else {
    }
    %c2_i32 = arith.constant 2 : i32
    %20 = arith.cmpi eq, %arg0, %c2_i32 : i32
    %21 = arith.extui %20 : i1 to i32
    %c0_i32_10 = arith.constant 0 : i32
    %22 = arith.cmpi ne, %21, %c0_i32_10 : i32
    scf.if %22 {
      %c0_11 = arith.constant 0 : index
      %c0_12 = arith.constant 0 : index
      %23 = vector.load %arg4[%c0_11, %c0_12] : memref<48x384xf32, #tpu.memory_space<vmem>>, vector<1x96xf32>
      %24 = vector.broadcast %23 : vector<1x96xf32> to vector<8x96xf32>
      %25 = arith.mulf %13, %24 : vector<8x96xf32>
      %c24 = arith.constant 24 : index
      %c0_13 = arith.constant 0 : index
      %26 = vector.load %arg4[%c24, %c0_13] : memref<48x384xf32, #tpu.memory_space<vmem>>, vector<1x96xf32>
      %27 = vector.broadcast %26 : vector<1x96xf32> to vector<8x96xf32>
      %28 = arith.addf %25, %27 : vector<8x96xf32>
      %c56 = arith.constant 56 : index
      %c0_14 = arith.constant 0 : index
      %29 = vector.load %arg3[%c56, %c0_14] : memref<592x384xf32, #tpu.memory_space<vmem>>, vector<96x288xf32>
      %c152 = arith.constant 152 : index
      %c0_15 = arith.constant 0 : index
      %30 = vector.load %arg3[%c152, %c0_15] : memref<592x384xf32, #tpu.memory_space<vmem>>, vector<1x288xf32>
      %cst_16 = arith.constant dense<0.000000e+00> : vector<8x288xf32>
      %31 = tpu.matmul %28, %29, %cst_16 {dimension_numbers = #tpu.dot_dimension_numbers<[1], [0], [0], [1], [0, 0, 1, 1], [], []>} : vector<8x96xf32>, vector<96x288xf32>, vector<8x288xf32> -> vector<8x288xf32>
      %32 = vector.broadcast %30 : vector<1x288xf32> to vector<8x288xf32>
      %33 = arith.addf %31, %32 : vector<8x288xf32>
      %cst_17 = arith.constant 0.00999999977 : f32
      %34 = vector.broadcast %cst_17 : f32 to vector<8x288xf32>
      %35 = arith.mulf %34, %33 : vector<8x288xf32>
      %36 = arith.maximumf %33, %35 : vector<8x288xf32>
      %c8 = arith.constant 8 : index
      %c0_18 = arith.constant 0 : index
      %37 = vector.load %arg4[%c8, %c0_18] : memref<48x384xf32, #tpu.memory_space<vmem>>, vector<1x288xf32>
      %38 = vector.broadcast %37 : vector<1x288xf32> to vector<8x288xf32>
      %39 = arith.mulf %36, %38 : vector<8x288xf32>
      %c32_19 = arith.constant 32 : index
      %c0_20 = arith.constant 0 : index
      %40 = vector.load %arg4[%c32_19, %c0_20] : memref<48x384xf32, #tpu.memory_space<vmem>>, vector<1x288xf32>
      %41 = vector.broadcast %40 : vector<1x288xf32> to vector<8x288xf32>
      %42 = arith.addf %39, %41 : vector<8x288xf32>
      %c176 = arith.constant 176 : index
      %c0_21 = arith.constant 0 : index
      %43 = vector.load %arg3[%c176, %c0_21] : memref<592x384xf32, #tpu.memory_space<vmem>>, vector<288x96xf32>
      %c464 = arith.constant 464 : index
      %c0_22 = arith.constant 0 : index
      %44 = vector.load %arg3[%c464, %c0_22] : memref<592x384xf32, #tpu.memory_space<vmem>>, vector<1x96xf32>
      %cst_23 = arith.constant dense<0.000000e+00> : vector<8x96xf32>
      %45 = tpu.matmul %42, %43, %cst_23 {dimension_numbers = #tpu.dot_dimension_numbers<[1], [0], [0], [1], [0, 0, 1, 1], [], []>} : vector<8x288xf32>, vector<288x96xf32>, vector<8x96xf32> -> vector<8x96xf32>
      %46 = vector.broadcast %44 : vector<1x96xf32> to vector<8x96xf32>
      %47 = arith.addf %45, %46 : vector<8x96xf32>
      %cst_24 = arith.constant 0.00999999977 : f32
      %48 = vector.broadcast %cst_24 : f32 to vector<8x96xf32>
      %49 = arith.mulf %48, %47 : vector<8x96xf32>
      %50 = arith.maximumf %47, %49 : vector<8x96xf32>
      %c0_i32_25 = arith.constant 0 : i32
      %51 = arith.cmpi eq, %arg1, %c0_i32_25 : i32
      %52 = arith.extui %51 : i1 to i32
      %c0_i32_26 = arith.constant 0 : i32
      %53 = arith.cmpi ne, %52, %c0_i32_26 : i32
      scf.if %53 {
        %cst_35 = arith.constant 0.000000e+00 : f32
        %65 = vector.broadcast %cst_35 : f32 to vector<16x384xf32>
        %c0_36 = arith.constant 0 : index
        %c0_37 = arith.constant 0 : index
        %66 = vector.load %arg5[%c0_36, %c0_37] : memref<16x384xf32, #tpu.memory_space<vmem>>, vector<16x384xf32>
        tpu.vector_store %arg5[%c0_36, %c0_37], %65 {strides = array<i32>} : memref<16x384xf32, #tpu.memory_space<vmem>>, vector<16x384xf32>,
      } else {
      }
      %c0_i32_27 = arith.constant 0 : i32
      %54 = arith.cmpi eq, %arg1, %c0_i32_27 : i32
      %55 = arith.extui %54 : i1 to i32
      %c0_i32_28 = arith.constant 0 : i32
      %56 = arith.cmpi ne, %55, %c0_i32_28 : i32
      scf.if %56 {
        %65 = tpu.iota {dimensions = array<i32: 1>} : vector<8x96xi32>
        %c0_i32_35 = arith.constant 0 : i32
        %66 = vector.broadcast %c0_i32_35 : i32 to vector<8x96xi32>
        %c12_i32 = arith.constant 12 : i32
        %67 = vector.broadcast %c12_i32 : i32 to vector<8x96xi32>
        %68 = arith.cmpi sge, %65, %67 : vector<8x96xi32>
        %69 = arith.extui %68 : vector<8x96xi1> to vector<8x96xi32>
        %70 = arith.addi %66, %69 : vector<8x96xi32>
        %c24_i32 = arith.constant 24 : i32
        %71 = vector.broadcast %c24_i32 : i32 to vector<8x96xi32>
        %72 = arith.cmpi sge, %65, %71 : vector<8x96xi32>
        %73 = arith.extui %72 : vector<8x96xi1> to vector<8x96xi32>
        %74 = arith.addi %70, %73 : vector<8x96xi32>
        %c36_i32 = arith.constant 36 : i32
        %75 = vector.broadcast %c36_i32 : i32 to vector<8x96xi32>
        %76 = arith.cmpi sge, %65, %75 : vector<8x96xi32>
        %77 = arith.extui %76 : vector<8x96xi1> to vector<8x96xi32>
        %78 = arith.addi %74, %77 : vector<8x96xi32>
        %c48_i32 = arith.constant 48 : i32
        %79 = vector.broadcast %c48_i32 : i32 to vector<8x96xi32>
        %80 = arith.cmpi sge, %65, %79 : vector<8x96xi32>
        %81 = arith.extui %80 : vector<8x96xi1> to vector<8x96xi32>
        %82 = arith.addi %78, %81 : vector<8x96xi32>
        %c60_i32 = arith.constant 60 : i32
        %83 = vector.broadcast %c60_i32 : i32 to vector<8x96xi32>
        %84 = arith.cmpi sge, %65, %83 : vector<8x96xi32>
        %85 = arith.extui %84 : vector<8x96xi1> to vector<8x96xi32>
        %86 = arith.addi %82, %85 : vector<8x96xi32>
        %c72_i32 = arith.constant 72 : i32
        %87 = vector.broadcast %c72_i32 : i32 to vector<8x96xi32>
        %88 = arith.cmpi sge, %65, %87 : vector<8x96xi32>
        %89 = arith.extui %88 : vector<8x96xi1> to vector<8x96xi32>
        %90 = arith.addi %86, %89 : vector<8x96xi32>
        %c84_i32 = arith.constant 84 : i32
        %91 = vector.broadcast %c84_i32 : i32 to vector<8x96xi32>
        %92 = arith.cmpi sge, %65, %91 : vector<8x96xi32>
        %93 = arith.extui %92 : vector<8x96xi1> to vector<8x96xi32>
        %94 = arith.addi %90, %93 : vector<8x96xi32>
        %95 = tpu.iota {dimensions = array<i32: 0>} : vector<8x96xi32>
        %c8_i32 = arith.constant 8 : i32
        %96 = arith.muli %arg1, %c8_i32 : i32
        %97 = vector.broadcast %96 : i32 to vector<8x96xi32>
        %98 = arith.addi %97, %95 : vector<8x96xi32>
        %c8_i32_36 = arith.constant 8 : i32
        %99 = vector.broadcast %c8_i32_36 : i32 to vector<8x96xi32>
        %100 = arith.muli %98, %99 : vector<8x96xi32>
        %101 = arith.addi %100, %94 : vector<8x96xi32>
        %c8_i32_37 = arith.constant 8 : i32
        %102 = vector.broadcast %c8_i32_37 : i32 to vector<8x96xi32>
        %103 = arith.cmpi slt, %101, %102 : vector<8x96xi32>
        %cst_38 = arith.constant 0.000000e+00 : f32
        %104 = vector.broadcast %cst_38 : f32 to vector<8x96xf32>
        %105 = arith.select %103, %50, %104 : vector<8x96xi1>, vector<8x96xf32>
        %c0_39 = arith.constant 0 : index
        %c0_40 = arith.constant 0 : index
        %106 = vector.load %arg5[%c0_39, %c0_40] : memref<16x384xf32, #tpu.memory_space<vmem>>, vector<1x96xf32>
        %cst_41 = arith.constant dense<0.000000e+00> : vector<96xf32>
        %107 = vector.multi_reduction <add>, %105, %cst_41 [0] : vector<8x96xf32> to vector<96xf32>
        %108 = vector.shape_cast %107 : vector<96xf32> to vector<1x96xf32>
        %109 = arith.addf %106, %108 : vector<1x96xf32>
        %c0_42 = arith.constant 0 : index
        %c0_43 = arith.constant 0 : index
        %110 = vector.load %arg5[%c0_42, %c0_43] : memref<16x384xf32, #tpu.memory_space<vmem>>, vector<1x96xf32>
        tpu.vector_store %arg5[%c0_42, %c0_43], %109 {strides = array<i32>} : memref<16x384xf32, #tpu.memory_space<vmem>>, vector<1x96xf32>,
        %c8_44 = arith.constant 8 : index
        %c0_45 = arith.constant 0 : index
        %111 = vector.load %arg5[%c8_44, %c0_45] : memref<16x384xf32, #tpu.memory_space<vmem>>, vector<1x96xf32>
        %112 = arith.mulf %105, %105 : vector<8x96xf32>
        %cst_46 = arith.constant dense<0.000000e+00> : vector<96xf32>
        %113 = vector.multi_reduction <add>, %112, %cst_46 [0] : vector<8x96xf32> to vector<96xf32>
        %114 = vector.shape_cast %113 : vector<96xf32> to vector<1x96xf32>
        %115 = arith.addf %111, %114 : vector<1x96xf32>
        %c8_47 = arith.constant 8 : index
        %c0_48 = arith.constant 0 : index
        %116 = vector.load %arg5[%c8_47, %c0_48] : memref<16x384xf32, #tpu.memory_space<vmem>>, vector<1x96xf32>
        tpu.vector_store %arg5[%c8_47, %c0_48], %115 {strides = array<i32>} : memref<16x384xf32, #tpu.memory_space<vmem>>, vector<1x96xf32>,
      } else {
      }
      %c0_i32_29 = arith.constant 0 : i32
      %57 = arith.cmpi ne, %arg1, %c0_i32_29 : i32
      %58 = arith.extui %57 : i1 to i32
      %c0_i32_30 = arith.constant 0 : i32
      %59 = arith.cmpi ne, %58, %c0_i32_30 : i32
      scf.if %59 {
        %c0_35 = arith.constant 0 : index
        %c0_36 = arith.constant 0 : index
        %65 = vector.load %arg5[%c0_35, %c0_36] : memref<16x384xf32, #tpu.memory_space<vmem>>, vector<1x96xf32>
        %cst_37 = arith.constant dense<0.000000e+00> : vector<96xf32>
        %66 = vector.multi_reduction <add>, %50, %cst_37 [0] : vector<8x96xf32> to vector<96xf32>
        %67 = vector.shape_cast %66 : vector<96xf32> to vector<1x96xf32>
        %68 = arith.addf %65, %67 : vector<1x96xf32>
        %c0_38 = arith.constant 0 : index
        %c0_39 = arith.constant 0 : index
        %69 = vector.load %arg5[%c0_38, %c0_39] : memref<16x384xf32, #tpu.memory_space<vmem>>, vector<1x96xf32>
        tpu.vector_store %arg5[%c0_38, %c0_39], %68 {strides = array<i32>} : memref<16x384xf32, #tpu.memory_space<vmem>>, vector<1x96xf32>,
        %c8_40 = arith.constant 8 : index
        %c0_41 = arith.constant 0 : index
        %70 = vector.load %arg5[%c8_40, %c0_41] : memref<16x384xf32, #tpu.memory_space<vmem>>, vector<1x96xf32>
        %71 = arith.mulf %50, %50 : vector<8x96xf32>
        %cst_42 = arith.constant dense<0.000000e+00> : vector<96xf32>
        %72 = vector.multi_reduction <add>, %71, %cst_42 [0] : vector<8x96xf32> to vector<96xf32>
        %73 = vector.shape_cast %72 : vector<96xf32> to vector<1x96xf32>
        %74 = arith.addf %70, %73 : vector<1x96xf32>
        %c8_43 = arith.constant 8 : index
        %c0_44 = arith.constant 0 : index
        %75 = vector.load %arg5[%c8_43, %c0_44] : memref<16x384xf32, #tpu.memory_space<vmem>>, vector<1x96xf32>
        tpu.vector_store %arg5[%c8_43, %c0_44], %74 {strides = array<i32>} : memref<16x384xf32, #tpu.memory_space<vmem>>, vector<1x96xf32>,
      } else {
      }
      %c472 = arith.constant 472 : index
      %c0_31 = arith.constant 0 : index
      %60 = vector.load %arg3[%c472, %c0_31] : memref<592x384xf32, #tpu.memory_space<vmem>>, vector<1x96xf32>
      %c480 = arith.constant 480 : index
      %c0_32 = arith.constant 0 : index
      %61 = vector.load %arg3[%c480, %c0_32] : memref<592x384xf32, #tpu.memory_space<vmem>>, vector<1x96xf32>
      %c0_i32_33 = arith.constant 0 : i32
      %62 = arith.cmpi eq, %arg1, %c0_i32_33 : i32
      %63 = arith.extui %62 : i1 to i32
      %c0_i32_34 = arith.constant 0 : i32
      %64 = arith.cmpi ne, %63, %c0_i32_34 : i32
      scf.if %64 {
        %c0_35 = arith.constant 0 : index
        %c0_36 = arith.constant 0 : index
        %65 = vector.load %arg5[%c0_35, %c0_36] : memref<16x384xf32, #tpu.memory_space<vmem>>, vector<1x96xf32>
        %c8_37 = arith.constant 8 : index
        %c0_38 = arith.constant 0 : index
        %66 = vector.load %arg5[%c8_37, %c0_38] : memref<16x384xf32, #tpu.memory_space<vmem>>, vector<1x96xf32>
        %67 = vector.extract_strided_slice %65 {offsets = [0, 0], sizes = [1, 12], strides = [1, 1]} : vector<1x96xf32> to vector<1x12xf32>
        %68 = vector.extract_strided_slice %66 {offsets = [0, 0], sizes = [1, 12], strides = [1, 1]} : vector<1x96xf32> to vector<1x12xf32>
        %69 = vector.extract_strided_slice %65 {offsets = [0, 12], sizes = [1, 12], strides = [1, 1]} : vector<1x96xf32> to vector<1x12xf32>
        %70 = arith.addf %67, %69 : vector<1x12xf32>
        %71 = vector.extract_strided_slice %66 {offsets = [0, 12], sizes = [1, 12], strides = [1, 1]} : vector<1x96xf32> to vector<1x12xf32>
        %72 = arith.addf %68, %71 : vector<1x12xf32>
        %73 = vector.extract_strided_slice %65 {offsets = [0, 24], sizes = [1, 12], strides = [1, 1]} : vector<1x96xf32> to vector<1x12xf32>
        %74 = arith.addf %70, %73 : vector<1x12xf32>
        %75 = vector.extract_strided_slice %66 {offsets = [0, 24], sizes = [1, 12], strides = [1, 1]} : vector<1x96xf32> to vector<1x12xf32>
        %76 = arith.addf %72, %75 : vector<1x12xf32>
        %77 = vector.extract_strided_slice %65 {offsets = [0, 36], sizes = [1, 12], strides = [1, 1]} : vector<1x96xf32> to vector<1x12xf32>
        %78 = arith.addf %74, %77 : vector<1x12xf32>
        %79 = vector.extract_strided_slice %66 {offsets = [0, 36], sizes = [1, 12], strides = [1, 1]} : vector<1x96xf32> to vector<1x12xf32>
        %80 = arith.addf %76, %79 : vector<1x12xf32>
        %81 = vector.extract_strided_slice %65 {offsets = [0, 48], sizes = [1, 12], strides = [1, 1]} : vector<1x96xf32> to vector<1x12xf32>
        %82 = arith.addf %78, %81 : vector<1x12xf32>
        %83 = vector.extract_strided_slice %66 {offsets = [0, 48], sizes = [1, 12], strides = [1, 1]} : vector<1x96xf32> to vector<1x12xf32>
        %84 = arith.addf %80, %83 : vector<1x12xf32>
        %85 = vector.extract_strided_slice %65 {offsets = [0, 60], sizes = [1, 12], strides = [1, 1]} : vector<1x96xf32> to vector<1x12xf32>
        %86 = arith.addf %82, %85 : vector<1x12xf32>
        %87 = vector.extract_strided_slice %66 {offsets = [0, 60], sizes = [1, 12], strides = [1, 1]} : vector<1x96xf32> to vector<1x12xf32>
        %88 = arith.addf %84, %87 : vector<1x12xf32>
        %89 = vector.extract_strided_slice %65 {offsets = [0, 72], sizes = [1, 12], strides = [1, 1]} : vector<1x96xf32> to vector<1x12xf32>
        %90 = arith.addf %86, %89 : vector<1x12xf32>
        %91 = vector.extract_strided_slice %66 {offsets = [0, 72], sizes = [1, 12], strides = [1, 1]} : vector<1x96xf32> to vector<1x12xf32>
        %92 = arith.addf %88, %91 : vector<1x12xf32>
        %93 = vector.extract_strided_slice %65 {offsets = [0, 84], sizes = [1, 12], strides = [1, 1]} : vector<1x96xf32> to vector<1x12xf32>
        %94 = arith.addf %90, %93 : vector<1x12xf32>
        %95 = vector.extract_strided_slice %66 {offsets = [0, 84], sizes = [1, 12], strides = [1, 1]} : vector<1x96xf32> to vector<1x12xf32>
        %96 = arith.addf %92, %95 : vector<1x12xf32>
        %cst_39 = arith.constant 1.250000e-01 : f32
        %97 = vector.broadcast %cst_39 : f32 to vector<1x12xf32>
        %98 = arith.mulf %94, %97 : vector<1x12xf32>
        %cst_40 = arith.constant 1.250000e-01 : f32
        %99 = vector.broadcast %cst_40 : f32 to vector<1x12xf32>
        %100 = arith.mulf %96, %99 : vector<1x12xf32>
        %101 = arith.mulf %98, %98 : vector<1x12xf32>
        %102 = arith.subf %100, %101 : vector<1x12xf32>
        %cst_41 = arith.constant 0.000000e+00 : f32
        %103 = vector.broadcast %cst_41 : f32 to vector<1x12xf32>
        %104 = arith.maximumf %102, %103 : vector<1x12xf32>
        %cst_42 = arith.constant 9.99999974E-6 : f32
        %105 = vector.broadcast %cst_42 : f32 to vector<1x12xf32>
        %106 = arith.addf %104, %105 : vector<1x12xf32>
        %107 = math.rsqrt %106 : vector<1x12xf32>
        %108 = tpu.concatenate %107, %107, %107, %107, %107, %107, %107, %107 in 1 : vector<1x12xf32>, vector<1x12xf32>, vector<1x12xf32>, vector<1x12xf32>, vector<1x12xf32>, vector<1x12xf32>, vector<1x12xf32>, vector<1x12xf32> -> vector<1x96xf32>
        %109 = arith.mulf %108, %60 : vector<1x96xf32>
        %110 = tpu.concatenate %98, %98, %98, %98, %98, %98, %98, %98 in 1 : vector<1x12xf32>, vector<1x12xf32>, vector<1x12xf32>, vector<1x12xf32>, vector<1x12xf32>, vector<1x12xf32>, vector<1x12xf32>, vector<1x12xf32> -> vector<1x96xf32>
        %111 = arith.mulf %110, %109 : vector<1x96xf32>
        %112 = arith.subf %61, %111 : vector<1x96xf32>
        %c16 = arith.constant 16 : index
        %c0_43 = arith.constant 0 : index
        %113 = vector.load %arg4[%c16, %c0_43] : memref<48x384xf32, #tpu.memory_space<vmem>>, vector<1x96xf32>
        tpu.vector_store %arg4[%c16, %c0_43], %109 {strides = array<i32>} : memref<48x384xf32, #tpu.memory_space<vmem>>, vector<1x96xf32>,
        %c40 = arith.constant 40 : index
        %c0_44 = arith.constant 0 : index
        %114 = vector.load %arg4[%c40, %c0_44] : memref<48x384xf32, #tpu.memory_space<vmem>>, vector<1x96xf32>
        tpu.vector_store %arg4[%c40, %c0_44], %112 {strides = array<i32>} : memref<48x384xf32, #tpu.memory_space<vmem>>, vector<1x96xf32>,
      } else {
      }
    } else {
    }
    return
  }
  func.func @transform_0(%arg0: i32, %arg1: i32) -> (i32, i32) {
    %c0_i32 = arith.constant 0 : i32
    %c0_i32_0 = arith.constant 0 : i32
    return %arg1, %c0_i32 : i32, i32
  }
  func.func @transform_1(%arg0: i32, %arg1: i32) -> (i32, i32) {
    %c0_i32 = arith.constant 0 : i32
    %c0_i32_0 = arith.constant 0 : i32
    %c0_i32_1 = arith.constant 0 : i32
    return %c0_i32, %c0_i32_0 : i32, i32
  }
  func.func @transform_2(%arg0: i32, %arg1: i32) -> (i32, i32) {
    %c0_i32 = arith.constant 0 : i32
    %c0_i32_0 = arith.constant 0 : i32
    %c0_i32_1 = arith.constant 0 : i32
    return %c0_i32, %c0_i32_0 : i32, i32
  }
}

</mosaic_0001>

<llo_original>
// kernel: tpu_custom_call.1
$region0: #{tpu_custom_call.1}
  #allocation0 [shape = 'u32[]', space=smem, size = 0x4, offset = 0x4, fixed_abs, tag = 'smem constant byte address 0x4 - core index']
  #allocation1 [shape = 'u32[144,128]{1,0:T(1,128)}', space=vmem, size = 0x12000, scoped, tag = 'internal scratch']
  #allocation2 [shape = 'f32[16,384]{1,0:T(8,128)}', space=vmem, size = 0x6000, scoped, tag = 'scratch operand']
  %s0 = inlined_call_operand.hbm [shape: f32[8,32], index: 0, kind: input, shape index: {}]
  %s1 = inlined_call_operand.hbm [shape: f32[592,384], index: 1, kind: input, shape index: {}]
  %s2 = inlined_call_operand.hbm [shape: f32[48,384], index: 2, kind: output, shape index: {}]
  %s3 = sld [smem:[#allocation0]]
  $region101: #{tpu_custom_call.1} parent=0
    _
  %s5 = ssub.s32 1, %s3
  %s6 = scalar_select 0, %s5, %s3
  $region1: #{tpu_custom_call.1} parent=0
    #allocation3 [shape = 'u8[4096]{0}', space=vmem, size = 0x1000, scoped, tag = 'input window, operand 0, single buffered']
    #allocation4 [shape = 's32[2]{0}', space=sflag, size = 0x8, scoped, tag = 'scoped memory for tpu_custom_call.1']
    #allocation5 [shape = 's32[2]{0}', space=sflag, size = 0x8, scoped, tag = 'scoped memory for tpu_custom_call.1']
    #allocation6 [shape = 'u8[909312]{0}', space=vmem, size = 0xde000, scoped, tag = 'input window, operand 1, single buffered']
    #allocation7 [shape = 's32[1]{0}', space=sflag, size = 0x4, scoped, tag = 'scoped memory for tpu_custom_call.1']
    #allocation8 [shape = 'u8[73728]{0}', space=vmem, size = 0x12000, scoped, tag = 'output window, operand 0, single buffered']
    %7 = vsyncpa [#allocation4], 0
    %8 = vsyncpa [#allocation7], 0
    %9 = vsyncpa [#allocation5], 0
    loop: start=0, step=1, limit=5
    $region2: #{tpu_custom_call.1} parent=1 // loop_pre_header
      _
    $region3: #{tpu_custom_call.1} parent=1 // loop_header
      %s11 = sphi 0, %s15
      %p12 = scmp.ge.s32.totalorder %s11, 5
      %s18 = sphi 0, %s30
      %s19 = sphi 0, %s26
      %s20 = sphi 0, %s18
      %s21 = sphi 0, %s19
      %s22 = sphi 0, %s20
      %s23 = sphi 0, %s21
      %s33 = sphi 0, %s35
      %s36 = sphi 0, %s33
      %s37 = sphi 0, %s36
      %s53 = sphi 0, %s37
      %s57 = sphi 0, %s57
      %s59 = sphi 0, %s57
      %s60 = sphi 0, %s59
      %s74 = sphi 0, %s60
      %s78 = sphi 0, %s78
      %s80 = sphi 0, %s78
      %s81 = sphi 0, %s80
      %s95 = sphi 0, %s81
    $region4: #{tpu_custom_call.1} parent=1 // loop_header_branch
      %14 = sbr.rel (%p12) target = $region8
    $region5: #{tpu_custom_call.1} parent=1 // loop_body
      %s16 = ssub.s32 %s11, 1
      %s17 = ssub.s32 %s11, 2
      %s24 = sadd.s32 1, %s19
      %p25 = scmp.ge.s32.totalorder %s24, 1
      %s26 = scalar_select %p25, 0, %s24
      %s27 = sadd.s32 1, %s18
      %s28 = scalar_select %p25, %s27, %s18
      %p29 = scmp.ge.s32.totalorder %s28, 3
      %s30 = scalar_select %p29, 0, %s28
      %s31 = ssub.s32 %s19, %s26
      %p32 = scmp.eq.s32.totalorder %s31, 0
      %s34 = sadd.s32 %s33, 1
      %s35 = scalar_select %p32, %s33, %s34
      %p38 = pneg %p32
      %p39 = scmp.eq.s32.totalorder %s11, 2
      %p40 = por %p38, %p39
      %p41 = scmp.ne.s32.totalorder %s33, %s36
      %p42 = scmp.eq.s32.totalorder %s11, 0
      %p43 = por %p41, %p42
      %p44 = scmp.ne.s32.totalorder %s33, %s36
      %p45 = scmp.eq.s32.totalorder %s16, 2
      %p46 = por %p44, %p45
      %p47 = scmp.ne.s32.totalorder %s36, %s37
      %p48 = scmp.eq.s32.totalorder %s16, 0
      %p49 = por %p47, %p48
      %p50 = scmp.ne.s32.totalorder %s36, %s37
      %p51 = scmp.eq.s32.totalorder %s17, 2
      %p52 = por %p50, %p51
      %p54 = scmp.ne.s32.totalorder %s37, %s53
      %p55 = scmp.eq.s32.totalorder %s17, 0
      %p56 = por %p54, %p55
      %s58 = sadd.s32 %s57, 1
      %p61 = scmp.eq.s32.totalorder %s11, 2
      %p62 = scmp.ne.s32.totalorder %s57, %s59
      %p63 = scmp.eq.s32.totalorder %s11, 0
      %p64 = por %p62, %p63
      %p65 = scmp.ne.s32.totalorder %s57, %s59
      %p66 = scmp.eq.s32.totalorder %s16, 2
      %p67 = por %p65, %p66
      %p68 = scmp.ne.s32.totalorder %s59, %s60
      %p69 = scmp.eq.s32.totalorder %s16, 0
      %p70 = por %p68, %p69
      %p71 = scmp.ne.s32.totalorder %s59, %s60
      %p72 = scmp.eq.s32.totalorder %s17, 2
      %p73 = por %p71, %p72
      %p75 = scmp.ne.s32.totalorder %s60, %s74
      %p76 = scmp.eq.s32.totalorder %s17, 0
      %p77 = por %p75, %p76
      %s79 = sadd.s32 %s78, 1
      %p82 = scmp.eq.s32.totalorder %s11, 2
      %p83 = scmp.ne.s32.totalorder %s78, %s80
      %p84 = scmp.eq.s32.totalorder %s11, 0
      %p85 = por %p83, %p84
      %p86 = scmp.ne.s32.totalorder %s78, %s80
      %p87 = scmp.eq.s32.totalorder %s16, 2
      %p88 = por %p86, %p87
      %p89 = scmp.ne.s32.totalorder %s80, %s81
      %p90 = scmp.eq.s32.totalorder %s16, 0
      %p91 = por %p89, %p90
      %p92 = scmp.ne.s32.totalorder %s80, %s81
      %p93 = scmp.eq.s32.totalorder %s17, 2
      %p94 = por %p92, %p93
      %p96 = scmp.ne.s32.totalorder %s81, %s95
      %p97 = scmp.eq.s32.totalorder %s17, 0
      %p98 = por %p96, %p97
      %p99 = scmp.le.s32.totalorder 1, %s11
      %p100 = scmp.lt.s32.totalorder %s11, 4
      %p101 = pnand %p99, %p100
      %p102 = pneg %p101
      // Predicated region
      $region9: #{tpu_custom_call.1} parent=5 // pred_check
        _
      $region10: #{tpu_custom_call.1} parent=5 // pred_check_branch
        %104 = sbr.rel (%p101) target = $region12
      $region11: #{tpu_custom_call.1} parent=5 // pred_region
        %s105 = ssub.s32 %s11, 1
        // Predicated region
        $region13: #{tpu_custom_call.1} parent=11 // pred_check
          %p106 = pneg %p49
        $region14: #{tpu_custom_call.1} parent=11 // pred_check_branch
          %108 = sbr.rel (%p106) target = $region16
        $region15: #{tpu_custom_call.1} parent=11 // pred_region
          %s110 = ssub.s32 128, 128
          %111 = vsyncadd [#allocation4], %s110
          %s112 = smul.addr %s21, 128
          %s113 = scalar_lea.hbm %s0, %s112
          %s115 = sshll.u32 [#allocation3], 4
          %s116 = int_to_ptr.vmem [resolvable:$true] %s115
          %118 = dma.hbm_to_vmem [thread:$0]  %s113, 128, %s116, [#allocation4]
        $region16: #{tpu_custom_call.1} parent=11 // pred_fallthru
          _
        // Predicated region
        $region17: #{tpu_custom_call.1} parent=11 // pred_check
          %p119 = pneg %p70
        $region18: #{tpu_custom_call.1} parent=11 // pred_check_branch
          %121 = sbr.rel (%p119) target = $region20
        $region19: #{tpu_custom_call.1} parent=11 // pred_region
          %s123 = ssub.s32 28416, 28416
          %124 = vsyncadd [#allocation7], %s123
          %s125 = sshll.u32 [#allocation6], 4
          %s126 = int_to_ptr.vmem [resolvable:$true] %s125
          %131 = dma.hbm_to_vmem [thread:$0]  %s1, 28416, %s126, [#allocation7], 384, 384, 24
        $region20: #{tpu_custom_call.1} parent=11 // pred_fallthru
          _
      $region12: #{tpu_custom_call.1} parent=5 // pred_fallthru
        _
      %p132 = scmp.lt.s32.totalorder %s11, 3
      // Predicated region
      $region21: #{tpu_custom_call.1} parent=5 // pred_check
        %p133 = pneg %p132
      $region22: #{tpu_custom_call.1} parent=5 // pred_check_branch
        %135 = sbr.rel (%p133) target = $region24
      $region23: #{tpu_custom_call.1} parent=5 // pred_region
        _
      $region24: #{tpu_custom_call.1} parent=5 // pred_fallthru
        _
      %p136 = scmp.le.s32.totalorder 1, %s11
      %p137 = scmp.lt.s32.totalorder %s11, 4
      %p138 = pnand %p136, %p137
      %p139 = pneg %p138
      // Predicated region
      $region25: #{tpu_custom_call.1} parent=5 // pred_check
        _
      $region26: #{tpu_custom_call.1} parent=5 // pred_check_branch
        %141 = sbr.rel (%p138) target = $region28
      $region27: #{tpu_custom_call.1} parent=5 // pred_region
        %s142 = ssub.s32 %s11, 1
        // Predicated region
        $region29: #{tpu_custom_call.1} parent=27 // pred_check
          %p143 = pneg %p49
        $region30: #{tpu_custom_call.1} parent=27 // pred_check_branch
          %145 = sbr.rel (%p143) target = $region32
        $region31: #{tpu_custom_call.1} parent=27 // pred_region
          %146 = dma.done [#allocation4], 128
        $region32: #{tpu_custom_call.1} parent=27 // pred_fallthru
          _
        // Predicated region
        $region33: #{tpu_custom_call.1} parent=27 // pred_check
          %p147 = pneg %p70
        $region34: #{tpu_custom_call.1} parent=27 // pred_check_branch
          %149 = sbr.rel (%p147) target = $region36
        $region35: #{tpu_custom_call.1} parent=27 // pred_region
          %150 = dma.done [#allocation7], 28416
        $region36: #{tpu_custom_call.1} parent=27 // pred_fallthru
          _
        %p151 = pneg %p49
        %p152 = pneg %p46
        %p153 = pneg %p70
        %p154 = pneg %p67
        %p155 = pneg %p91
        %p156 = pneg %p88
        %p157 = scmp.eq.s32.totalorder %s20, 0
        %p158 = scmp.eq.s32.totalorder %s21, 0
        %p159 = pnand %p157, %p158
        %p160 = pneg %p159
        // Predicated region
        $region37: #{tpu_custom_call.1} parent=27 // pred_check
          _
        $region38: #{tpu_custom_call.1} parent=27 // pred_check_branch
          %162 = sbr.rel (%p159) target = $region40
        $region39: #{tpu_custom_call.1} parent=27 // pred_region
          %163 = vst [vmem:[#allocation8] sm:$0xff] 0.0
          %164 = vst [vmem:[#allocation8 + $0x8] sm:$0xff] 0.0
          %165 = vst [vmem:[#allocation8 + $0x10] sm:$0xff] 0.0
          %166 = vst [vmem:[#allocation8 + $0x18] sm:$0xff] 0.0
          %167 = vst [vmem:[#allocation8 + $0x20] sm:$0xff] 0.0
          %168 = vst [vmem:[#allocation8 + $0x28] sm:$0xff] 0.0
          %169 = vst [vmem:[#allocation8 + $0x30] sm:$0xff] 0.0
          %170 = vst [vmem:[#allocation8 + $0x38] sm:$0xff] 0.0
          %171 = vst [vmem:[#allocation8 + $0x40] sm:$0xff] 0.0
          %172 = vst [vmem:[#allocation8 + $0x48] sm:$0xff] 0.0
          %173 = vst [vmem:[#allocation8 + $0x50] sm:$0xff] 0.0
          %174 = vst [vmem:[#allocation8 + $0x58] sm:$0xff] 0.0
          %175 = vst [vmem:[#allocation8 + $0x60] sm:$0xff] 0.0
          %176 = vst [vmem:[#allocation8 + $0x68] sm:$0xff] 0.0
          %177 = vst [vmem:[#allocation8 + $0x70] sm:$0xff] 0.0
          %178 = vst [vmem:[#allocation8 + $0x78] sm:$0xff] 0.0
          %179 = vst [vmem:[#allocation8 + $0x80] sm:$0xff] 0.0
          %180 = vst [vmem:[#allocation8 + $0x88] sm:$0xff] 0.0
        $region40: #{tpu_custom_call.1} parent=27 // pred_fallthru
          _
        %v181 = vld [vmem:[#allocation3] sm:$0xff]
        %v182 = vld [vmem:[#allocation6] sm:$0xff]
        %v183 = vld [vmem:[#allocation6 + $0x18] sm:$0xff]
        %v184 = vld [vmem:[#allocation6 + $0x30] sm:$0xff]
        %v185 = vld [vmem:[#allocation6 + $0x48] sm:$0xff]
        %v186 = vld [vmem:[#allocation6 + $0x60] ss:$0 sm:$0xff]
        %vm187 = vcmask 261120
        %v189 = vsel %vm187, %v181, 0
        %191 = vmatprep.subr.mxu0 0.0
        %192 = vmatpush1.msra.mxu0 %v182
        %193 = vmatprep.subr.mxu0 0.0
        %194 = vmatpush1.msra.mxu0 %v183
        %195 = vmatprep.subr.mxu0 0.0
        %196 = vmatpush1.msra.mxu0 %v184
        %197 = vmatprep.subr.mxu0 0.0
        %198 = vmatpush1.msra.mxu0 %v185
        %199 = vmatprep.subr.mxu0 0.0
        %200 = vmatpush1.msra.mxu0 0.0
        %201 = vmatprep.subr.mxu0 0.0
        %202 = vmatpush1.msra.mxu0 0.0
        %203 = vmatprep.subr.mxu0 0.0
        %204 = vmatpush1.msra.mxu0 0.0
        %205 = vmatprep.subr.mxu0 0.0
        %206 = vmatpush1.msra.mxu0 0.0
        %207 = vmatprep.subr.mxu0 0.0
        %208 = vmatpush1.msra.mxu0 0.0
        %209 = vmatprep.subr.mxu0 0.0
        %210 = vmatpush1.msra.mxu0 0.0
        %211 = vmatprep.subr.mxu0 0.0
        %212 = vmatpush1.msra.mxu0 0.0
        %213 = vmatprep.subr.mxu0 0.0
        %214 = vmatpush1.msra.mxu0 0.0
        %215 = vmatprep.subr.mxu0 0.0
        %216 = vmatpush1.msra.mxu0 0.0
        %217 = vmatprep.subr.mxu0 0.0
        %218 = vmatpush1.msra.mxu0 0.0
        %219 = vmatprep.subr.mxu0 0.0
        %220 = vmatpush1.msra.mxu0 0.0
        %221 = vmatprep.subr.mxu0 0.0
        %222 = vmatpush1.msra.mxu0 0.0
        %223 = vmatprep.subr.mxu0 0.0
        %224 = vmatpush1.msra.mxu0 0.0
        %225 = vmatprep.subr.mxu0 0.0
        %226 = vmatpush1.msra.mxu0 0.0
        %227 = vmatprep.subr.mxu0 0.0
        %228 = vmatpush1.msra.mxu0 0.0
        %229 = vmatprep.subr.mxu0 0.0
        %230 = vmatpush1.msra.mxu0 0.0
        %231 = vmatprep.subr.mxu0 0.0
        %232 = vmatpush1.msra.mxu0 0.0
        %233 = vmatprep.subr.mxu0 0.0
        %234 = vmatpush1.msra.mxu0 0.0
        %235 = vmatprep.subr.mxu0 0.0
        %236 = vmatpush1.msra.mxu0 0.0
        %237 = vmatprep.subr.mxu0 0.0
        %238 = vmatpush1.msra.mxu0 0.0
        %239 = vmatprep.subr.mxu0 0.0
        %240 = vmatpush1.msra.mxu0 0.0
        %241 = vmatprep.subr.mxu0 0.0
        %242 = vmatpush1.msra.mxu0 0.0
        %243 = vmatprep.subr.mxu0 0.0
        %244 = vmatpush1.msra.mxu0 0.0
        %245 = vmatprep.subr.mxu0 0.0
        %246 = vmatpush1.msra.mxu0 0.0
        %247 = vmatprep.subr.mxu0 0.0
        %248 = vmatpush1.msra.mxu0 0.0
        %249 = vmatprep.subr.mxu0 0.0
        %250 = vmatpush1.msra.mxu0 0.0
        %251 = vmatprep.subr.mxu0 0.0
        %252 = vmatpush1.msra.mxu0 0.0
        %253 = vmatprep.subr.mxu0 0.0
        %254 = vmatpush1.msra.mxu0 0.0
        %255 = vmatprep.mubr.f32.mxu0 0.0
        %256 = vmatmul.mubr.f32.gmra.mrb[0].mxu0 %v189
        %v257 = vpop.f32.mrb[0].mxu0
        %v258 = vadd.f32 %v186, %v257
        %v259 = vpop.f32.mrb[0].mxu0
        %260 = vdwg.mxu0
        %v261 = vmul.f32 %v258, 0.01
        %v262 = vmax.f32 %v258, %v261
        // Predicated region
        $region41: #{tpu_custom_call.1} parent=27 // pred_check
          %p263 = pneg %p157
        $region42: #{tpu_custom_call.1} parent=27 // pred_check_branch
          %265 = sbr.rel (%p263) target = $region44
        $region43: #{tpu_custom_call.1} parent=27 // pred_region
          // Predicated region
          $region45: #{tpu_custom_call.1} parent=43 // pred_check
            %p266 = pneg %p158
          $region46: #{tpu_custom_call.1} parent=43 // pred_check_branch
            %268 = sbr.rel (%p266) target = $region48
          $region47: #{tpu_custom_call.1} parent=43 // pred_region
            %269 = vst [vmem:[#allocation2] sm:$0xff] 0.0
            %270 = vst [vmem:[#allocation2 + $0x8] sm:$0xff] 0.0
            %271 = vst [vmem:[#allocation2 + $0x10] sm:$0xff] 0.0
            %272 = vst [vmem:[#allocation2 + $0x18] sm:$0xff] 0.0
            %273 = vst [vmem:[#allocation2 + $0x20] sm:$0xff] 0.0
            %274 = vst [vmem:[#allocation2 + $0x28] sm:$0xff] 0.0
            %v275 = vlaneseq
            %v276 = vand.u32 %v275, 127
            %vm277 = vcmp.ge.s32.totalorder %v276, 12
            %v278 = vsel %vm277, 1, 0
            %vm279 = vcmp.ge.s32.totalorder %v276, 24
            %v280 = vsel %vm279, 1, 0
            %v281 = vadd.s32 %v278, %v280
            %vm282 = vcmp.ge.s32.totalorder %v276, 36
            %v283 = vsel %vm282, 1, 0
            %v284 = vadd.s32 %v281, %v283
            %vm285 = vcmp.ge.s32.totalorder %v276, 48
            %v286 = vsel %vm285, 1, 0
            %v287 = vadd.s32 %v284, %v286
            %vm288 = vcmp.ge.s32.totalorder %v276, 60
            %v289 = vsel %vm288, 1, 0
            %v290 = vadd.s32 %v287, %v289
            %vm291 = vcmp.ge.s32.totalorder %v276, 72
            %v292 = vsel %vm291, 1, 0
            %v293 = vadd.s32 %v290, %v292
            %vm294 = vcmp.ge.s32.totalorder %v276, 84
            %v295 = vsel %vm294, 1, 0
            %v296 = vadd.s32 %v293, %v295
            %v297 = vlaneseq
            %v298 = vshrl.u32 %v297, 7
            %s299 = smul.u32 %s21, 8
            %v300 = vstv %s299
            %v301 = vadd.s32 %v300, %v298
            %v302 = vmul.u32 %v301, 8
            %v303 = vadd.s32 %v302, %v296
            %vm304 = vcmp.lt.s32.totalorder %v303, 8
            %v305 = vsel %vm304, %v262, 0.0
            %v306 = vld [vmem:[#allocation2] ss:$0 sm:$0xff]
            %vm307 = vcmask 785408
            %v308 = vsel %vm307, %v305, 0.0
            %v309 = vrot.slane %v308, 4
            %v310 = vadd.f32 %v308, %v309
            %v311 = vrot.slane %v310, 2
            %v312 = vadd.f32 %v310, %v311
            %v313 = vrot.slane %v312, 1
            %v314 = vadd.f32 %v312, %v313
            %v315 = vadd.f32 %v306, %v314
            %vm316 = vcmask 778240
            %317 = vst.msk [vmem:[#allocation2] sm:$0x1] %vm316, %v315
            %v318 = vld [vmem:[#allocation2 + $0x18] ss:$0 sm:$0xff]
            %v319 = vmul.f32 %v305, %v305
            %v320 = vsel %vm307, %v319, 0.0
            %v321 = vrot.slane %v320, 4
            %v322 = vadd.f32 %v320, %v321
            %v323 = vrot.slane %v322, 2
            %v324 = vadd.f32 %v322, %v323
            %v325 = vrot.slane %v324, 1
            %v326 = vadd.f32 %v324, %v325
            %v327 = vadd.f32 %v318, %v326
            %328 = vst.msk [vmem:[#allocation2 + $0x18] sm:$0x1] %vm316, %v327
          $region48: #{tpu_custom_call.1} parent=43 // pred_fallthru
            _
          %p329 = scmp.ne.s32.totalorder %s21, 0
          // Predicated region
          $region49: #{tpu_custom_call.1} parent=43 // pred_check
            %p330 = pneg %p329
          $region50: #{tpu_custom_call.1} parent=43 // pred_check_branch
            %332 = sbr.rel (%p330) target = $region52
          $region51: #{tpu_custom_call.1} parent=43 // pred_region
            %v333 = vld [vmem:[#allocation2] ss:$0 sm:$0xff]
            %vm334 = vcmask 785408
            %v335 = vsel %vm334, %v262, 0.0
            %v336 = vrot.slane %v335, 4
            %v337 = vadd.f32 %v335, %v336
            %v338 = vrot.slane %v337, 2
            %v339 = vadd.f32 %v337, %v338
            %v340 = vrot.slane %v339, 1
            %v341 = vadd.f32 %v339, %v340
            %v342 = vadd.f32 %v333, %v341
            %vm343 = vcmask 778240
            %344 = vst.msk [vmem:[#allocation2] sm:$0x1] %vm343, %v342
            %v345 = vld [vmem:[#allocation2 + $0x18] ss:$0 sm:$0xff]
            %v346 = vmul.f32 %v262, %v262
            %v347 = vsel %vm334, %v346, 0.0
            %v348 = vrot.slane %v347, 4
            %v349 = vadd.f32 %v347, %v348
            %v350 = vrot.slane %v349, 2
            %v351 = vadd.f32 %v349, %v350
            %v352 = vrot.slane %v351, 1
            %v353 = vadd.f32 %v351, %v352
            %v354 = vadd.f32 %v345, %v353
            %355 = vst.msk [vmem:[#allocation2 + $0x18] sm:$0x1] %vm343, %v354
          $region52: #{tpu_custom_call.1} parent=43 // pred_fallthru
            _
          %v356 = vld [vmem:[#allocation6 + $0x78] ss:$0 sm:$0xff]
          %v357 = vld [vmem:[#allocation6 + $0x90] ss:$0 sm:$0xff]
          // Predicated region
          $region53: #{tpu_custom_call.1} parent=43 // pred_check
            %p358 = pneg %p158
          $region54: #{tpu_custom_call.1} parent=43 // pred_check_branch
            %360 = sbr.rel (%p358) target = $region56
          $region55: #{tpu_custom_call.1} parent=43 // pred_region
            %v361 = vld [vmem:[#allocation2] ss:$0 sm:$0xff]
            %v362 = vld [vmem:[#allocation2 + $0x18] ss:$0 sm:$0xff]
            %364 = vrot.lane.b32.xlu0 %v361, 116
            %v365 = vpop.permute.xlu0 %364
            %v367 = vadd.f32 %v361, %v365
            %369 = vrot.lane.b32.xlu0 %v362, 116
            %v370 = vpop.permute.xlu0 %369
            %v372 = vadd.f32 %v362, %v370
            %373 = vrot.lane.b32.xlu0 %v361, 104
            %v374 = vpop.permute.xlu0 %373
            %v376 = vadd.f32 %v367, %v374
            %377 = vrot.lane.b32.xlu0 %v362, 104
            %v378 = vpop.permute.xlu0 %377
            %v380 = vadd.f32 %v372, %v378
            %381 = vrot.lane.b32.xlu0 %v361, 92
            %v382 = vpop.permute.xlu0 %381
            %v384 = vadd.f32 %v376, %v382
            %385 = vrot.lane.b32.xlu0 %v362, 92
            %v386 = vpop.permute.xlu0 %385
            %v388 = vadd.f32 %v380, %v386
            %389 = vrot.lane.b32.xlu0 %v361, 80
            %v390 = vpop.permute.xlu0 %389
            %v392 = vadd.f32 %v384, %v390
            %393 = vrot.lane.b32.xlu0 %v362, 80
            %v394 = vpop.permute.xlu0 %393
            %v396 = vadd.f32 %v388, %v394
            %397 = vrot.lane.b32.xlu0 %v361, 68
            %v398 = vpop.permute.xlu0 %397
            %v400 = vadd.f32 %v392, %v398
            %401 = vrot.lane.b32.xlu0 %v362, 68
            %v402 = vpop.permute.xlu0 %401
            %v404 = vadd.f32 %v396, %v402
            %405 = vrot.lane.b32.xlu0 %v361, 56
            %v406 = vpop.permute.xlu0 %405
            %v408 = vadd.f32 %v400, %v406
            %409 = vrot.lane.b32.xlu0 %v362, 56
            %v410 = vpop.permute.xlu0 %409
            %v412 = vadd.f32 %v404, %v410
            %413 = vrot.lane.b32.xlu0 %v361, 44
            %v414 = vpop.permute.xlu0 %413
            %v416 = vadd.f32 %v408, %v414
            %417 = vrot.lane.b32.xlu0 %v362, 44
            %v418 = vpop.permute.xlu0 %417
            %v420 = vadd.f32 %v412, %v418
            %v421 = vmul.f32 %v416, 0.125
            %v422 = vmul.f32 %v420, 0.125
            %v423 = vmul.f32 %v421, %v421
            %v424 = vsub.f32 %v422, %v423
            %v425 = vmax.f32 %v424, 0.0
            %v426 = vadd.f32 %v425, 1e-05
            %v427 = vrsqrt.pop %v426
            %429 = vrot.lane.b32.xlu0 %v427, 12
            %v430 = vpop.permute.xlu0 %429
            %432 = vrot.lane.b32.xlu0 %v427, 24
            %v433 = vpop.permute.xlu0 %432
            %435 = vrot.lane.b32.xlu0 %v427, 36
            %v436 = vpop.permute.xlu0 %435
            %438 = vrot.lane.b32.xlu0 %v427, 48
            %v439 = vpop.permute.xlu0 %438
            %441 = vrot.lane.b32.xlu0 %v427, 60
            %v442 = vpop.permute.xlu0 %441
            %444 = vrot.lane.b32.xlu0 %v427, 72
            %v445 = vpop.permute.xlu0 %444
            %447 = vrot.lane.b32.xlu0 %v427, 84
            %v448 = vpop.permute.xlu0 %447
            %vm450 = vcmask 97280
            %v451 = vsel %vm450, %v427, %v430
            %vm452 = vcmask 195584
            %v453 = vsel %vm452, %v451, %v433
            %vm454 = vcmask 293888
            %v455 = vsel %vm454, %v453, %v436
            %vm456 = vcmask 392192
            %v457 = vsel %vm456, %v455, %v439
            %vm458 = vcmask 490496
            %v459 = vsel %vm458, %v457, %v442
            %vm460 = vcmask 588800
            %v461 = vsel %vm460, %v459, %v445
            %vm462 = vcmask 687104
            %v463 = vsel %vm462, %v461, %v448
            %v464 = vmul.f32 %v463, %v356
            %466 = vrot.lane.b32.xlu0 %v421, 12
            %v467 = vpop.permute.xlu0 %466
            %469 = vrot.lane.b32.xlu0 %v421, 24
            %v470 = vpop.permute.xlu0 %469
            %472 = vrot.lane.b32.xlu0 %v421, 36
            %v473 = vpop.permute.xlu0 %472
            %475 = vrot.lane.b32.xlu0 %v421, 48
            %v476 = vpop.permute.xlu0 %475
            %478 = vrot.lane.b32.xlu0 %v421, 60
            %v479 = vpop.permute.xlu0 %478
            %481 = vrot.lane.b32.xlu0 %v421, 72
            %v482 = vpop.permute.xlu0 %481
            %484 = vrot.lane.b32.xlu0 %v421, 84
            %v485 = vpop.permute.xlu0 %484
            %v487 = vsel %vm450, %v421, %v467
            %v488 = vsel %vm452, %v487, %v470
            %v489 = vsel %vm454, %v488, %v473
            %v490 = vsel %vm456, %v489, %v476
            %v491 = vsel %vm458, %v490, %v479
            %v492 = vsel %vm460, %v491, %v482
            %v493 = vsel %vm462, %v492, %v485
            %v494 = vmul.f32 %v493, %v464
            %v495 = vsub.f32 %v357, %v494
            %vm496 = vcmask 778240
            %497 = vst.msk [vmem:[#allocation8] sm:$0x1] %vm496, %v464
            %498 = vst.msk [vmem:[#allocation8 + $0x48] sm:$0x1] %vm496, %v495
          $region56: #{tpu_custom_call.1} parent=43 // pred_fallthru
            _
        $region44: #{tpu_custom_call.1} parent=27 // pred_fallthru
          _
        %p499 = scmp.eq.s32.totalorder %s20, 1
        // Predicated region
        $region57: #{tpu_custom_call.1} parent=27 // pred_check
          %p500 = pneg %p499
        $region58: #{tpu_custom_call.1} parent=27 // pred_check_branch
          %502 = sbr.rel (%p500) target = $region60
        $region59: #{tpu_custom_call.1} parent=27 // pred_region
          %v503 = vld [vmem:[#allocation8] ss:$0 sm:$0xff]
          %v504 = vmul.f32 %v262, %v503
          %v505 = vld [vmem:[#allocation8 + $0x48] ss:$0 sm:$0xff]
          %v506 = vadd.f32 %v504, %v505
          %v507 = vld [vmem:[#allocation6 + $0xa8] sm:$0xff]
          %v508 = vld [vmem:[#allocation6 + $0xb0] sm:$0xff]
          %v509 = vld [vmem:[#allocation6 + $0xb8] sm:$0xff]
          %v510 = vld [vmem:[#allocation6 + $0xc0] sm:$0xff]
          %v511 = vld [vmem:[#allocation6 + $0xc8] sm:$0xff]
          %v512 = vld [vmem:[#allocation6 + $0xd0] sm:$0xff]
          %v513 = vld [vmem:[#allocation6 + $0xd8] sm:$0xff]
          %v514 = vld [vmem:[#allocation6 + $0xe0] sm:$0xff]
          %v515 = vld [vmem:[#allocation6 + $0xe8] sm:$0xff]
          %v516 = vld [vmem:[#allocation6 + $0xf0] sm:$0xff]
          %v517 = vld [vmem:[#allocation6 + $0xf8] sm:$0xff]
          %v518 = vld [vmem:[#allocation6 + $0x100] sm:$0xff]
          %v519 = vld [vmem:[#allocation6 + $0x108] sm:$0xff]
          %v520 = vld [vmem:[#allocation6 + $0x110] sm:$0xff]
          %v521 = vld [vmem:[#allocation6 + $0x118] sm:$0xff]
          %v522 = vld [vmem:[#allocation6 + $0x120] sm:$0xff]
          %v523 = vld [vmem:[#allocation6 + $0x128] sm:$0xff]
          %v524 = vld [vmem:[#allocation6 + $0x130] sm:$0xff]
          %v525 = vld [vmem:[#allocation6 + $0x138] sm:$0xff]
          %v526 = vld [vmem:[#allocation6 + $0x140] sm:$0xff]
          %v527 = vld [vmem:[#allocation6 + $0x148] sm:$0xff]
          %v528 = vld [vmem:[#allocation6 + $0x150] sm:$0xff]
          %v529 = vld [vmem:[#allocation6 + $0x158] sm:$0xff]
          %v530 = vld [vmem:[#allocation6 + $0x160] sm:$0xff]
          %v531 = vld [vmem:[#allocation6 + $0x168] sm:$0xff]
          %v532 = vld [vmem:[#allocation6 + $0x170] sm:$0xff]
          %v533 = vld [vmem:[#allocation6 + $0x178] sm:$0xff]
          %v534 = vld [vmem:[#allocation6 + $0x180] sm:$0xff]
          %v535 = vld [vmem:[#allocation6 + $0x188] sm:$0xff]
          %v536 = vld [vmem:[#allocation6 + $0x190] sm:$0xff]
          %v537 = vld [vmem:[#allocation6 + $0x198] sm:$0xff]
          %v538 = vld [vmem:[#allocation6 + $0x1a0] sm:$0xff]
          %v539 = vld [vmem:[#allocation6 + $0x1a8] sm:$0xff]
          %v540 = vld [vmem:[#allocation6 + $0x1b0] sm:$0xff]
          %v541 = vld [vmem:[#allocation6 + $0x1b8] sm:$0xff]
          %v542 = vld [vmem:[#allocation6 + $0x1c0] sm:$0xff]
          %s543 = scalar_lea.vmem [#allocation6], 456
          %v544 = vld [vmem:[%s543] ss:$8 sm:$0x7]
          %v546 = vlaneseq
          %v547 = vshrl.u32 %v546, 7
          %v548 = vsub.s32 0, %v547
          %v549 = vrot.slane %v544, %v548
          %v550 = vlaneseq
          %v551 = vshrl.u32 %v550, 7
          %v552 = vsub.s32 1, %v551
          %v553 = vrot.slane %v544, %v552
          %v554 = vlaneseq
          %v555 = vshrl.u32 %v554, 7
          %v556 = vsub.s32 2, %v555
          %v557 = vrot.slane %v544, %v556
          %vm561 = vcmask 785408
          %v563 = vsel %vm561, %v506, 0
          %565 = vmatprep.subr.mxu0 %v508
          %566 = vmatpush1.msra.mxu0 %v507
          %567 = vmatprep.subr.mxu0 %v511
          %568 = vmatpush1.msra.mxu0 %v510
          %569 = vmatprep.subr.mxu0 %v514
          %570 = vmatpush1.msra.mxu0 %v513
          %571 = vmatprep.subr.mxu0 %v517
          %572 = vmatpush1.msra.mxu0 %v516
          %573 = vmatprep.subr.mxu0 %v520
          %574 = vmatpush1.msra.mxu0 %v519
          %575 = vmatprep.subr.mxu0 %v523
          %576 = vmatpush1.msra.mxu0 %v522
          %577 = vmatprep.subr.mxu0 %v526
          %578 = vmatpush1.msra.mxu0 %v525
          %579 = vmatprep.subr.mxu0 %v529
          %580 = vmatpush1.msra.mxu0 %v528
          %581 = vmatprep.subr.mxu0 %v532
          %582 = vmatpush1.msra.mxu0 %v531
          %583 = vmatprep.subr.mxu0 %v535
          %584 = vmatpush1.msra.mxu0 %v534
          %585 = vmatprep.subr.mxu0 %v538
          %586 = vmatpush1.msra.mxu0 %v537
          %587 = vmatprep.subr.mxu0 %v541
          %588 = vmatpush1.msra.mxu0 %v540
          %589 = vmatprep.subr.mxu0 0.0
          %590 = vmatpush1.msra.mxu0 0.0
          %591 = vmatprep.subr.mxu0 0.0
          %592 = vmatpush1.msra.mxu0 0.0
          %593 = vmatprep.subr.mxu0 0.0
          %594 = vmatpush1.msra.mxu0 0.0
          %595 = vmatprep.subr.mxu0 0.0
          %596 = vmatpush1.msra.mxu0 0.0
          %597 = vmatprep.subr.mxu0 0.0
          %598 = vmatpush1.msra.mxu0 0.0
          %599 = vmatprep.subr.mxu0 0.0
          %600 = vmatpush1.msra.mxu0 0.0
          %601 = vmatprep.subr.mxu0 0.0
          %602 = vmatpush1.msra.mxu0 0.0
          %603 = vmatprep.subr.mxu0 0.0
          %604 = vmatpush1.msra.mxu0 0.0
          %605 = vmatprep.subr.mxu0 0.0
          %606 = vmatpush1.msra.mxu0 0.0
          %607 = vmatprep.subr.mxu0 0.0
          %608 = vmatpush1.msra.mxu0 0.0
          %609 = vmatprep.subr.mxu0 0.0
          %610 = vmatpush1.msra.mxu0 0.0
          %611 = vmatprep.subr.mxu0 0.0
          %612 = vmatpush1.msra.mxu0 0.0
          %613 = vmatprep.subr.mxu0 0.0
          %614 = vmatpush1.msra.mxu0 0.0
          %615 = vmatprep.subr.mxu0 0.0
          %616 = vmatpush1.msra.mxu0 0.0
          %617 = vmatprep.subr.mxu0 0.0
          %618 = vmatpush1.msra.mxu0 0.0
          %619 = vmatprep.subr.mxu0 0.0
          %620 = vmatpush1.msra.mxu0 0.0
          %621 = vmatprep.subr.mxu0 0.0
          %622 = vmatpush1.msra.mxu0 0.0
          %623 = vmatprep.subr.mxu0 0.0
          %624 = vmatpush1.msra.mxu0 0.0
          %625 = vmatprep.subr.mxu0 0.0
          %626 = vmatpush1.msra.mxu0 0.0
          %627 = vmatprep.subr.mxu0 0.0
          %628 = vmatpush1.msra.mxu0 0.0
          %629 = vmatprep.mubr.f32.mxu0 0.0
          %630 = vmatmul.mubr.f32.gmra.mrb[0].mxu0 %v563
          %v631 = vpop.f32.mrb[0].mxu0
          %v632 = vadd.f32 %v549, %v631
          %v633 = vpop.f32.mrb[0].mxu0
          %v634 = vadd.f32 %v553, %v633
          %635 = vdwg.mxu0
          %636 = vmatprep.subr.mxu0 0.0
          %637 = vmatpush1.msra.mxu0 %v509
          %638 = vmatprep.subr.mxu0 0.0
          %639 = vmatpush1.msra.mxu0 %v512
          %640 = vmatprep.subr.mxu0 0.0
          %641 = vmatpush1.msra.mxu0 %v515
          %642 = vmatprep.subr.mxu0 0.0
          %643 = vmatpush1.msra.mxu0 %v518
          %644 = vmatprep.subr.mxu0 0.0
          %645 = vmatpush1.msra.mxu0 %v521
          %646 = vmatprep.subr.mxu0 0.0
          %647 = vmatpush1.msra.mxu0 %v524
          %648 = vmatprep.subr.mxu0 0.0
          %649 = vmatpush1.msra.mxu0 %v527
          %650 = vmatprep.subr.mxu0 0.0
          %651 = vmatpush1.msra.mxu0 %v530
          %652 = vmatprep.subr.mxu0 0.0
          %653 = vmatpush1.msra.mxu0 %v533
          %654 = vmatprep.subr.mxu0 0.0
          %655 = vmatpush1.msra.mxu0 %v536
          %656 = vmatprep.subr.mxu0 0.0
          %657 = vmatpush1.msra.mxu0 %v539
          %658 = vmatprep.subr.mxu0 0.0
          %659 = vmatpush1.msra.mxu0 %v542
          %660 = vmatprep.subr.mxu0 0.0
          %661 = vmatpush1.msra.mxu0 0.0
          %662 = vmatprep.subr.mxu0 0.0
          %663 = vmatpush1.msra.mxu0 0.0
          %664 = vmatprep.subr.mxu0 0.0
          %665 = vmatpush1.msra.mxu0 0.0
          %666 = vmatprep.subr.mxu0 0.0
          %667 = vmatpush1.msra.mxu0 0.0
          %668 = vmatprep.subr.mxu0 0.0
          %669 = vmatpush1.msra.mxu0 0.0
          %670 = vmatprep.subr.mxu0 0.0
          %671 = vmatpush1.msra.mxu0 0.0
          %672 = vmatprep.subr.mxu0 0.0
          %673 = vmatpush1.msra.mxu0 0.0
          %674 = vmatprep.subr.mxu0 0.0
          %675 = vmatpush1.msra.mxu0 0.0
          %676 = vmatprep.subr.mxu0 0.0
          %677 = vmatpush1.msra.mxu0 0.0
          %678 = vmatprep.subr.mxu0 0.0
          %679 = vmatpush1.msra.mxu0 0.0
          %680 = vmatprep.subr.mxu0 0.0
          %681 = vmatpush1.msra.mxu0 0.0
          %682 = vmatprep.subr.mxu0 0.0
          %683 = vmatpush1.msra.mxu0 0.0
          %684 = vmatprep.subr.mxu0 0.0
          %685 = vmatpush1.msra.mxu0 0.0
          %686 = vmatprep.subr.mxu0 0.0
          %687 = vmatpush1.msra.mxu0 0.0
          %688 = vmatprep.subr.mxu0 0.0
          %689 = vmatpush1.msra.mxu0 0.0
          %690 = vmatprep.subr.mxu0 0.0
          %691 = vmatpush1.msra.mxu0 0.0
          %692 = vmatprep.subr.mxu0 0.0
          %693 = vmatpush1.msra.mxu0 0.0
          %694 = vmatprep.subr.mxu0 0.0
          %695 = vmatpush1.msra.mxu0 0.0
          %696 = vmatprep.subr.mxu0 0.0
          %697 = vmatpush1.msra.mxu0 0.0
          %698 = vmatprep.subr.mxu0 0.0
          %699 = vmatpush1.msra.mxu0 0.0
          %700 = vmatprep.mubr.f32.mxu0 0.0
          %701 = vmatmul.mubr.f32.gmra.mrb[0].mxu0 %v563
          %v702 = vpop.f32.mrb[0].mxu0
          %v703 = vadd.f32 %v557, %v702
          %v704 = vpop.f32.mrb[0].mxu0
          %705 = vdwg.mxu0
          %v706 = vmul.f32 %v632, 0.01
          %v707 = vmul.f32 %v634, 0.01
          %v708 = vmul.f32 %v703, 0.01
          %v709 = vmax.f32 %v632, %v706
          %v710 = vmax.f32 %v634, %v707
          %v711 = vmax.f32 %v703, %v708
          // Predicated region
          $region61: #{tpu_custom_call.1} parent=59 // pred_check
            %p712 = pneg %p158
          $region62: #{tpu_custom_call.1} parent=59 // pred_check_branch
            %714 = sbr.rel (%p712) target = $region64
          $region63: #{tpu_custom_call.1} parent=59 // pred_region
            %715 = vst [vmem:[#allocation2] sm:$0xff] 0.0
            %716 = vst [vmem:[#allocation2 + $0x8] sm:$0xff] 0.0
            %717 = vst [vmem:[#allocation2 + $0x10] sm:$0xff] 0.0
            %718 = vst [vmem:[#allocation2 + $0x18] sm:$0xff] 0.0
            %719 = vst [vmem:[#allocation2 + $0x20] sm:$0xff] 0.0
            %720 = vst [vmem:[#allocation2 + $0x28] sm:$0xff] 0.0
            %v721 = vlaneseq
            %v722 = vand.u32 %v721, 127
            %v723 = vadd.s32 %v722, 128
            %v724 = vadd.s32 %v722, 256
            %vm725 = vcmp.ge.s32.totalorder %v722, 36
            %vm726 = vcmp.ge.s32.totalorder %v723, 36
            %vm727 = vcmp.ge.s32.totalorder %v724, 36
            %v728 = vsel %vm725, 1, 0
            %v729 = vsel %vm726, 1, 0
            %v730 = vsel %vm727, 1, 0
            %vm731 = vcmp.ge.s32.totalorder %v722, 72
            %vm732 = vcmp.ge.s32.totalorder %v723, 72
            %vm733 = vcmp.ge.s32.totalorder %v724, 72
            %v734 = vsel %vm731, 1, 0
            %v735 = vsel %vm732, 1, 0
            %v736 = vsel %vm733, 1, 0
            %v737 = vadd.s32 %v728, %v734
            %v738 = vadd.s32 %v729, %v735
            %v739 = vadd.s32 %v730, %v736
            %vm740 = vcmp.ge.s32.totalorder %v722, 108
            %vm741 = vcmp.ge.s32.totalorder %v723, 108
            %vm742 = vcmp.ge.s32.totalorder %v724, 108
            %v743 = vsel %vm740, 1, 0
            %v744 = vsel %vm741, 1, 0
            %v745 = vsel %vm742, 1, 0
            %v746 = vadd.s32 %v737, %v743
            %v747 = vadd.s32 %v738, %v744
            %v748 = vadd.s32 %v739, %v745
            %vm749 = vcmp.ge.s32.totalorder %v722, 144
            %vm750 = vcmp.ge.s32.totalorder %v723, 144
            %vm751 = vcmp.ge.s32.totalorder %v724, 144
            %v752 = vsel %vm749, 1, 0
            %v753 = vsel %vm750, 1, 0
            %v754 = vsel %vm751, 1, 0
            %v755 = vadd.s32 %v746, %v752
            %v756 = vadd.s32 %v747, %v753
            %v757 = vadd.s32 %v748, %v754
            %vm758 = vcmp.ge.s32.totalorder %v722, 180
            %vm759 = vcmp.ge.s32.totalorder %v723, 180
            %vm760 = vcmp.ge.s32.totalorder %v724, 180
            %v761 = vsel %vm758, 1, 0
            %v762 = vsel %vm759, 1, 0
            %v763 = vsel %vm760, 1, 0
            %v764 = vadd.s32 %v755, %v761
            %v765 = vadd.s32 %v756, %v762
            %v766 = vadd.s32 %v757, %v763
            %vm767 = vcmp.ge.s32.totalorder %v722, 216
            %vm768 = vcmp.ge.s32.totalorder %v723, 216
            %vm769 = vcmp.ge.s32.totalorder %v724, 216
            %v770 = vsel %vm767, 1, 0
            %v771 = vsel %vm768, 1, 0
            %v772 = vsel %vm769, 1, 0
            %v773 = vadd.s32 %v764, %v770
            %v774 = vadd.s32 %v765, %v771
            %v775 = vadd.s32 %v766, %v772
            %vm776 = vcmp.ge.s32.totalorder %v722, 252
            %vm777 = vcmp.ge.s32.totalorder %v723, 252
            %vm778 = vcmp.ge.s32.totalorder %v724, 252
            %v779 = vsel %vm776, 1, 0
            %v780 = vsel %vm777, 1, 0
            %v781 = vsel %vm778, 1, 0
            %v782 = vadd.s32 %v773, %v779
            %v783 = vadd.s32 %v774, %v780
            %v784 = vadd.s32 %v775, %v781
            %v785 = vlaneseq
            %v786 = vshrl.u32 %v785, 7
            %s787 = smul.u32 %s21, 8
            %v788 = vstv %s787
            %v789 = vadd.s32 %v788, %v786
            %v790 = vmul.u32 %v789, 8
            %v791 = vadd.s32 %v790, %v782
            %v792 = vadd.s32 %v790, %v783
            %v793 = vadd.s32 %v790, %v784
            %vm794 = vcmp.lt.s32.totalorder %v791, 8
            %vm795 = vcmp.lt.s32.totalorder %v792, 8
            %vm796 = vcmp.lt.s32.totalorder %v793, 8
            %v797 = vsel %vm794, %v709, 0.0
            %v798 = vsel %vm795, %v710, 0.0
            %v799 = vsel %vm796, %v711, 0.0
            %v800 = vld [vmem:[#allocation2] ss:$8 sm:$0x7]
            %v801 = vrot.slane %v797, 4
            %v802 = vadd.f32 %v797, %v801
            %v803 = vrot.slane %v802, 2
            %v804 = vadd.f32 %v802, %v803
            %v805 = vrot.slane %v804, 1
            %v806 = vadd.f32 %v804, %v805
            %v807 = vrot.slane %v798, 4
            %v808 = vadd.f32 %v798, %v807
            %v809 = vrot.slane %v808, 2
            %v810 = vadd.f32 %v808, %v809
            %v811 = vrot.slane %v810, 1
            %v812 = vadd.f32 %v810, %v811
            %v813 = vsel %vm187, %v799, 0.0
            %v814 = vrot.slane %v813, 4
            %v815 = vadd.f32 %v813, %v814
            %v816 = vrot.slane %v815, 2
            %v817 = vadd.f32 %v815, %v816
            %v818 = vrot.slane %v817, 1
            %v819 = vadd.f32 %v817, %v818
            %v823 = vcombine.low %v806, %v812
            %v825 = vunpack.c.l.s4 1966171168
            %v826 = vunpack.c.0.s8 %v825
            %v827 = vlaneseq
            %v828 = vshrl.u32 %v827, 7
            %v829 = vsub.s32 %v826, %v828
            %v830 = vrot.slane %v823, %v829
            %v832 = vunpack.c.l.s4 1966171168
            %v833 = vunpack.c.0.s8 %v832
            %v834 = vlaneseq
            %v835 = vshrl.u32 %v834, 7
            %v836 = vsub.s32 %v833, %v835
            %v837 = vrot.slane %v819, %v836
            %v838 = vcombine.low %v830, %v837
            %v840 = vunpack.c.l.s4 1966171168
            %v841 = vunpack.c.0.s8 %v840
            %v842 = vlaneseq
            %v843 = vshrl.u32 %v842, 7
            %v844 = vsub.s32 %v841, %v843
            %v845 = vrot.slane %v838, %v844
            %v847 = vadd.f32 %v800, %v845
            %v848 = vlaneseq
            %vm849 = vcmp.ge.s32.totalorder %v848, 0
            %vm850 = vcmp.lt.s32.totalorder %v848, 288
            %vm851 = vmand %vm849, %vm850
            %852 = vst.msk [vmem:[#allocation2] ss:$8 sm:$0x7] %vm851, %v847
            %853 = vst.msk [vmem:[#allocation2] ss:$8 sm:$0x0] %vm851, %v847
            %s854 = scalar_lea.vmem [#allocation2], 24
            %v855 = vld [vmem:[%s854] ss:$8 sm:$0x7]
            %v856 = vmul.f32 %v797, %v797
            %v857 = vmul.f32 %v798, %v798
            %v858 = vmul.f32 %v799, %v799
            %v859 = vrot.slane %v856, 4
            %v860 = vadd.f32 %v856, %v859
            %v861 = vrot.slane %v860, 2
            %v862 = vadd.f32 %v860, %v861
            %v863 = vrot.slane %v862, 1
            %v864 = vadd.f32 %v862, %v863
            %v865 = vrot.slane %v857, 4
            %v866 = vadd.f32 %v857, %v865
            %v867 = vrot.slane %v866, 2
            %v868 = vadd.f32 %v866, %v867
            %v869 = vrot.slane %v868, 1
            %v870 = vadd.f32 %v868, %v869
            %v871 = vsel %vm187, %v858, 0.0
            %v872 = vrot.slane %v871, 4
            %v873 = vadd.f32 %v871, %v872
            %v874 = vrot.slane %v873, 2
            %v875 = vadd.f32 %v873, %v874
            %v876 = vrot.slane %v875, 1
            %v877 = vadd.f32 %v875, %v876
            %v881 = vcombine.low %v864, %v870
            %v883 = vunpack.c.l.s4 1966171168
            %v884 = vunpack.c.0.s8 %v883
            %v885 = vlaneseq
            %v886 = vshrl.u32 %v885, 7
            %v887 = vsub.s32 %v884, %v886
            %v888 = vrot.slane %v881, %v887
            %v890 = vunpack.c.l.s4 1966171168
            %v891 = vunpack.c.0.s8 %v890
            %v892 = vlaneseq
            %v893 = vshrl.u32 %v892, 7
            %v894 = vsub.s32 %v891, %v893
            %v895 = vrot.slane %v877, %v894
            %v896 = vcombine.low %v888, %v895
            %v898 = vunpack.c.l.s4 1966171168
            %v899 = vunpack.c.0.s8 %v898
            %v900 = vlaneseq
            %v901 = vshrl.u32 %v900, 7
            %v902 = vsub.s32 %v899, %v901
            %v903 = vrot.slane %v896, %v902
            %v905 = vadd.f32 %v855, %v903
            %906 = vst.msk [vmem:[%s854] ss:$8 sm:$0x7] %vm851, %v905
            %907 = vst.msk [vmem:[%s854] ss:$8 sm:$0x0] %vm851, %v905
          $region64: #{tpu_custom_call.1} parent=59 // pred_fallthru
            _
          %p908 = scmp.ne.s32.totalorder %s21, 0
          // Predicated region
          $region65: #{tpu_custom_call.1} parent=59 // pred_check
            %p909 = pneg %p908
          $region66: #{tpu_custom_call.1} parent=59 // pred_check_branch
            %911 = sbr.rel (%p909) target = $region68
          $region67: #{tpu_custom_call.1} parent=59 // pred_region
            %v912 = vld [vmem:[#allocation2] ss:$8 sm:$0x7]
            %v913 = vrot.slane %v709, 4
            %v914 = vadd.f32 %v709, %v913
            %v915 = vrot.slane %v914, 2
            %v916 = vadd.f32 %v914, %v915
            %v917 = vrot.slane %v916, 1
            %v918 = vadd.f32 %v916, %v917
            %v919 = vrot.slane %v710, 4
            %v920 = vadd.f32 %v710, %v919
            %v921 = vrot.slane %v920, 2
            %v922 = vadd.f32 %v920, %v921
            %v923 = vrot.slane %v922, 1
            %v924 = vadd.f32 %v922, %v923
            %v925 = vsel %vm187, %v711, 0.0
            %v926 = vrot.slane %v925, 4
            %v927 = vadd.f32 %v925, %v926
            %v928 = vrot.slane %v927, 2
            %v929 = vadd.f32 %v927, %v928
            %v930 = vrot.slane %v929, 1
            %v931 = vadd.f32 %v929, %v930
            %v935 = vcombine.low %v918, %v924
            %v937 = vunpack.c.l.s4 1966171168
            %v938 = vunpack.c.0.s8 %v937
            %v939 = vlaneseq
            %v940 = vshrl.u32 %v939, 7
            %v941 = vsub.s32 %v938, %v940
            %v942 = vrot.slane %v935, %v941
            %v944 = vunpack.c.l.s4 1966171168
            %v945 = vunpack.c.0.s8 %v944
            %v946 = vlaneseq
            %v947 = vshrl.u32 %v946, 7
            %v948 = vsub.s32 %v945, %v947
            %v949 = vrot.slane %v931, %v948
            %v950 = vcombine.low %v942, %v949
            %v952 = vunpack.c.l.s4 1966171168
            %v953 = vunpack.c.0.s8 %v952
            %v954 = vlaneseq
            %v955 = vshrl.u32 %v954, 7
            %v956 = vsub.s32 %v953, %v955
            %v957 = vrot.slane %v950, %v956
            %v959 = vadd.f32 %v912, %v957
            %v960 = vlaneseq
            %vm961 = vcmp.ge.s32.totalorder %v960, 0
            %vm962 = vcmp.lt.s32.totalorder %v960, 288
            %vm963 = vmand %vm961, %vm962
            %964 = vst.msk [vmem:[#allocation2] ss:$8 sm:$0x7] %vm963, %v959
            %965 = vst.msk [vmem:[#allocation2] ss:$8 sm:$0x0] %vm963, %v959
            %s966 = scalar_lea.vmem [#allocation2], 24
            %v967 = vld [vmem:[%s966] ss:$8 sm:$0x7]
            %v968 = vmul.f32 %v709, %v709
            %v969 = vmul.f32 %v710, %v710
            %v970 = vmul.f32 %v711, %v711
            %v971 = vrot.slane %v968, 4
            %v972 = vadd.f32 %v968, %v971
            %v973 = vrot.slane %v972, 2
            %v974 = vadd.f32 %v972, %v973
            %v975 = vrot.slane %v974, 1
            %v976 = vadd.f32 %v974, %v975
            %v977 = vrot.slane %v969, 4
            %v978 = vadd.f32 %v969, %v977
            %v979 = vrot.slane %v978, 2
            %v980 = vadd.f32 %v978, %v979
            %v981 = vrot.slane %v980, 1
            %v982 = vadd.f32 %v980, %v981
            %v983 = vsel %vm187, %v970, 0.0
            %v984 = vrot.slane %v983, 4
            %v985 = vadd.f32 %v983, %v984
            %v986 = vrot.slane %v985, 2
            %v987 = vadd.f32 %v985, %v986
            %v988 = vrot.slane %v987, 1
            %v989 = vadd.f32 %v987, %v988
            %v993 = vcombine.low %v976, %v982
            %v995 = vunpack.c.l.s4 1966171168
            %v996 = vunpack.c.0.s8 %v995
            %v997 = vlaneseq
            %v998 = vshrl.u32 %v997, 7
            %v999 = vsub.s32 %v996, %v998
            %v1000 = vrot.slane %v993, %v999
            %v1002 = vunpack.c.l.s4 1966171168
            %v1003 = vunpack.c.0.s8 %v1002
            %v1004 = vlaneseq
            %v1005 = vshrl.u32 %v1004, 7
            %v1006 = vsub.s32 %v1003, %v1005
            %v1007 = vrot.slane %v989, %v1006
            %v1008 = vcombine.low %v1000, %v1007
            %v1010 = vunpack.c.l.s4 1966171168
            %v1011 = vunpack.c.0.s8 %v1010
            %v1012 = vlaneseq
            %v1013 = vshrl.u32 %v1012, 7
            %v1014 = vsub.s32 %v1011, %v1013
            %v1015 = vrot.slane %v1008, %v1014
            %v1017 = vadd.f32 %v967, %v1015
            %1018 = vst.msk [vmem:[%s966] ss:$8 sm:$0x7] %vm963, %v1017
            %1019 = vst.msk [vmem:[%s966] ss:$8 sm:$0x0] %vm963, %v1017
          $region68: #{tpu_custom_call.1} parent=59 // pred_fallthru
            _
          %s1020 = scalar_lea.vmem [#allocation6], 480
          %v1021 = vld [vmem:[%s1020] ss:$8 sm:$0x7]
          %s1022 = scalar_lea.vmem [#allocation6], 504
          %v1023 = vld [vmem:[%s1022] ss:$8 sm:$0x7]
          // Predicated region
          $region69: #{tpu_custom_call.1} parent=59 // pred_check
            %p1024 = pneg %p158
          $region70: #{tpu_custom_call.1} parent=59 // pred_check_branch
            %1026 = sbr.rel (%p1024) target = $region72
          $region71: #{tpu_custom_call.1} parent=59 // pred_region
            %v1027 = vld [vmem:[#allocation2] ss:$8 sm:$0x7]
            %s1028 = scalar_lea.vmem [#allocation2], 24
            %v1029 = vld [vmem:[%s1028] ss:$8 sm:$0x7]
            %1031 = vrot.lane.b32.xlu0 %v1027, 92
            %v1032 = vpop.permute.xlu0 %1031
            %v1034 = vadd.f32 %v1027, %v1032
            %1036 = vrot.lane.b32.xlu0 %v1029, 92
            %v1037 = vpop.permute.xlu0 %1036
            %v1039 = vadd.f32 %v1029, %v1037
            %1040 = vrot.lane.b32.xlu0 %v1027, 56
            %v1041 = vpop.permute.xlu0 %1040
            %v1043 = vadd.f32 %v1034, %v1041
            %1044 = vrot.lane.b32.xlu0 %v1029, 56
            %v1045 = vpop.permute.xlu0 %1044
            %v1047 = vadd.f32 %v1039, %v1045
            %1048 = vrot.lane.b32.xlu0 %v1027, 20
            %v1049 = vpop.permute.xlu0 %1048
            %v1050 = vrot.slane %v1049, 1
            %vm1051 = vcmask 162816
            %v1052 = vsel %vm1051, %v1049, %v1050
            %v1054 = vadd.f32 %v1043, %v1052
            %1055 = vrot.lane.b32.xlu0 %v1029, 20
            %v1056 = vpop.permute.xlu0 %1055
            %v1057 = vrot.slane %v1056, 1
            %v1058 = vsel %vm1051, %v1056, %v1057
            %v1060 = vadd.f32 %v1047, %v1058
            %1061 = vrot.lane.b32.xlu0 %v1027, 112
            %v1062 = vpop.permute.xlu0 %1061
            %v1063 = vrot.slane %v1062, 1
            %v1065 = vadd.f32 %v1054, %v1063
            %1066 = vrot.lane.b32.xlu0 %v1029, 112
            %v1067 = vpop.permute.xlu0 %1066
            %v1068 = vrot.slane %v1067, 1
            %v1070 = vadd.f32 %v1060, %v1068
            %1071 = vrot.lane.b32.xlu0 %v1027, 76
            %v1072 = vpop.permute.xlu0 %1071
            %v1073 = vrot.slane %v1072, 1
            %v1075 = vadd.f32 %v1065, %v1073
            %1076 = vrot.lane.b32.xlu0 %v1029, 76
            %v1077 = vpop.permute.xlu0 %1076
            %v1078 = vrot.slane %v1077, 1
            %v1080 = vadd.f32 %v1070, %v1078
            %1081 = vrot.lane.b32.xlu0 %v1027, 40
            %v1082 = vpop.permute.xlu0 %1081
            %v1083 = vrot.slane %v1082, 1
            %v1085 = vadd.f32 %v1075, %v1083
            %1086 = vrot.lane.b32.xlu0 %v1029, 40
            %v1087 = vpop.permute.xlu0 %1086
            %v1088 = vrot.slane %v1087, 1
            %v1090 = vadd.f32 %v1080, %v1088
            %1091 = vrot.lane.b32.xlu0 %v1027, 4
            %v1092 = vpop.permute.xlu0 %1091
            %v1093 = vrot.slane %v1092, 1
            %v1094 = vrot.slane %v1092, 2
            %vm1095 = vcmask 31744
            %v1096 = vsel %vm1095, %v1093, %v1094
            %v1098 = vadd.f32 %v1085, %v1096
            %1099 = vrot.lane.b32.xlu0 %v1029, 4
            %v1100 = vpop.permute.xlu0 %1099
            %v1101 = vrot.slane %v1100, 1
            %v1102 = vrot.slane %v1100, 2
            %v1103 = vsel %vm1095, %v1101, %v1102
            %v1105 = vadd.f32 %v1090, %v1103
            %v1106 = vmul.f32 %v1098, 0.125
            %v1107 = vmul.f32 %v1105, 0.125
            %v1108 = vmul.f32 %v1106, %v1106
            %v1109 = vsub.f32 %v1107, %v1108
            %v1110 = vmax.f32 %v1109, 0.0
            %v1111 = vadd.f32 %v1110, 1e-05
            %v1112 = vrsqrt.pop %v1111
            %v1114 = vlaneseq
            %v1115 = vshrl.u32 %v1114, 7
            %v1116 = vsub.s32 0, %v1115
            %v1117 = vrot.slane %v1112, %v1116
            %1118 = vrot.lane.b32.xlu0 %v1117, 36
            %v1119 = vpop.permute.xlu0 %1118
            %1121 = vrot.lane.b32.xlu0 %v1117, 72
            %v1122 = vpop.permute.xlu0 %1121
            %1124 = vrot.lane.b32.xlu0 %v1117, 108
            %v1125 = vpop.permute.xlu0 %1124
            %1127 = vrot.lane.b32.xlu0 %v1117, 16
            %v1128 = vpop.permute.xlu0 %1127
            %1130 = vrot.lane.b32.xlu0 %v1117, 52
            %v1131 = vpop.permute.xlu0 %1130
            %1133 = vrot.lane.b32.xlu0 %v1117, 88
            %v1134 = vpop.permute.xlu0 %1133
            %1136 = vrot.lane.b32.xlu0 %v1117, 124
            %v1137 = vpop.permute.xlu0 %1136
            %vm1139 = vcmask 293888
            %v1140 = vsel %vm1139, %v1112, %v1119
            %vm1141 = vcmask 588800
            %v1142 = vsel %vm1141, %v1140, %v1122
            %vm1143 = vcmask 883712
            %v1144 = vsel %vm1143, %v1142, %v1125
            %vm1145 = vcmask 130048
            %v1146 = vsel %vm1145, %v1125, %v1128
            %vm1147 = vcmask 424960
            %v1148 = vsel %vm1147, %v1146, %v1131
            %vm1149 = vcmask 719872
            %v1150 = vsel %vm1149, %v1148, %v1134
            %vm1151 = vcmask 1014784
            %v1152 = vsel %vm1151, %v1150, %v1137
            %v1154 = vlaneseq
            %v1155 = vshrl.u32 %v1154, 7
            %v1156 = vsub.s32 0, %v1155
            %v1157 = vrot.slane %v1021, %v1156
            %v1158 = vlaneseq
            %v1159 = vshrl.u32 %v1158, 7
            %v1160 = vsub.s32 1, %v1159
            %v1161 = vrot.slane %v1021, %v1160
            %v1162 = vlaneseq
            %v1163 = vshrl.u32 %v1162, 7
            %v1164 = vsub.s32 2, %v1163
            %v1165 = vrot.slane %v1021, %v1164
            %v1169 = vmul.f32 %v1144, %v1157
            %v1170 = vmul.f32 %v1152, %v1161
            %v1171 = vmul.f32 %v1137, %v1165
            %v1173 = vlaneseq
            %v1174 = vshrl.u32 %v1173, 7
            %v1175 = vsub.s32 0, %v1174
            %v1176 = vrot.slane %v1106, %v1175
            %1177 = vrot.lane.b32.xlu0 %v1176, 36
            %v1178 = vpop.permute.xlu0 %1177
            %1180 = vrot.lane.b32.xlu0 %v1176, 72
            %v1181 = vpop.permute.xlu0 %1180
            %1183 = vrot.lane.b32.xlu0 %v1176, 108
            %v1184 = vpop.permute.xlu0 %1183
            %1186 = vrot.lane.b32.xlu0 %v1176, 16
            %v1187 = vpop.permute.xlu0 %1186
            %1189 = vrot.lane.b32.xlu0 %v1176, 52
            %v1190 = vpop.permute.xlu0 %1189
            %1192 = vrot.lane.b32.xlu0 %v1176, 88
            %v1193 = vpop.permute.xlu0 %1192
            %1195 = vrot.lane.b32.xlu0 %v1176, 124
            %v1196 = vpop.permute.xlu0 %1195
            %v1198 = vsel %vm1139, %v1106, %v1178
            %v1199 = vsel %vm1141, %v1198, %v1181
            %v1200 = vsel %vm1143, %v1199, %v1184
            %v1201 = vsel %vm1145, %v1184, %v1187
            %v1202 = vsel %vm1147, %v1201, %v1190
            %v1203 = vsel %vm1149, %v1202, %v1193
            %v1204 = vsel %vm1151, %v1203, %v1196
            %v1205 = vmul.f32 %v1200, %v1169
            %v1206 = vmul.f32 %v1204, %v1170
            %v1207 = vmul.f32 %v1196, %v1171
            %v1211 = vcombine.low %v1205, %v1206
            %v1213 = vunpack.c.l.s4 1966171168
            %v1214 = vunpack.c.0.s8 %v1213
            %v1215 = vlaneseq
            %v1216 = vshrl.u32 %v1215, 7
            %v1217 = vsub.s32 %v1214, %v1216
            %v1218 = vrot.slane %v1211, %v1217
            %v1220 = vunpack.c.l.s4 1966171168
            %v1221 = vunpack.c.0.s8 %v1220
            %v1222 = vlaneseq
            %v1223 = vshrl.u32 %v1222, 7
            %v1224 = vsub.s32 %v1221, %v1223
            %v1225 = vrot.slane %v1207, %v1224
            %v1226 = vcombine.low %v1218, %v1225
            %v1228 = vunpack.c.l.s4 1966171168
            %v1229 = vunpack.c.0.s8 %v1228
            %v1230 = vlaneseq
            %v1231 = vshrl.u32 %v1230, 7
            %v1232 = vsub.s32 %v1229, %v1231
            %v1233 = vrot.slane %v1226, %v1232
            %v1235 = vsub.f32 %v1023, %v1233
            %v1239 = vcombine.low %v1169, %v1170
            %v1241 = vunpack.c.l.s4 1966171168
            %v1242 = vunpack.c.0.s8 %v1241
            %v1243 = vlaneseq
            %v1244 = vshrl.u32 %v1243, 7
            %v1245 = vsub.s32 %v1242, %v1244
            %v1246 = vrot.slane %v1239, %v1245
            %v1248 = vunpack.c.l.s4 1966171168
            %v1249 = vunpack.c.0.s8 %v1248
            %v1250 = vlaneseq
            %v1251 = vshrl.u32 %v1250, 7
            %v1252 = vsub.s32 %v1249, %v1251
            %v1253 = vrot.slane %v1171, %v1252
            %v1254 = vcombine.low %v1246, %v1253
            %v1256 = vunpack.c.l.s4 1966171168
            %v1257 = vunpack.c.0.s8 %v1256
            %v1258 = vlaneseq
            %v1259 = vshrl.u32 %v1258, 7
            %v1260 = vsub.s32 %v1257, %v1259
            %v1261 = vrot.slane %v1254, %v1260
            %v1263 = vlaneseq
            %vm1264 = vcmp.ge.s32.totalorder %v1263, 0
            %vm1265 = vcmp.lt.s32.totalorder %v1263, 288
            %vm1266 = vmand %vm1264, %vm1265
            %s1267 = scalar_lea.vmem [#allocation8], 24
            %1268 = vst.msk [vmem:[%s1267] ss:$8 sm:$0x7] %vm1266, %v1261
            %1269 = vst.msk [vmem:[%s1267] ss:$8 sm:$0x0] %vm1266, %v1261
            %s1270 = scalar_lea.vmem [#allocation8], 96
            %1271 = vst.msk [vmem:[%s1270] ss:$8 sm:$0x7] %vm1266, %v1235
            %1272 = vst.msk [vmem:[%s1270] ss:$8 sm:$0x0] %vm1266, %v1235
          $region72: #{tpu_custom_call.1} parent=59 // pred_fallthru
            _
        $region60: #{tpu_custom_call.1} parent=27 // pred_fallthru
          _
        %p1273 = scmp.eq.s32.totalorder %s20, 2
        // Predicated region
        $region73: #{tpu_custom_call.1} parent=27 // pred_check
          %p1274 = pneg %p1273
        $region74: #{tpu_custom_call.1} parent=27 // pred_check_branch
          %1276 = sbr.rel (%p1274) target = $region76
        $region75: #{tpu_custom_call.1} parent=27 // pred_region
          %v1277 = vld [vmem:[#allocation8] ss:$0 sm:$0xff]
          %v1278 = vmul.f32 %v262, %v1277
          %v1279 = vld [vmem:[#allocation8 + $0x48] ss:$0 sm:$0xff]
          %v1280 = vadd.f32 %v1278, %v1279
          %v1281 = vld [vmem:[#allocation6 + $0xa8] sm:$0xff]
          %v1282 = vld [vmem:[#allocation6 + $0xb0] sm:$0xff]
          %v1283 = vld [vmem:[#allocation6 + $0xb8] sm:$0xff]
          %v1284 = vld [vmem:[#allocation6 + $0xc0] sm:$0xff]
          %v1285 = vld [vmem:[#allocation6 + $0xc8] sm:$0xff]
          %v1286 = vld [vmem:[#allocation6 + $0xd0] sm:$0xff]
          %v1287 = vld [vmem:[#allocation6 + $0xd8] sm:$0xff]
          %v1288 = vld [vmem:[#allocation6 + $0xe0] sm:$0xff]
          %v1289 = vld [vmem:[#allocation6 + $0xe8] sm:$0xff]
          %v1290 = vld [vmem:[#allocation6 + $0xf0] sm:$0xff]
          %v1291 = vld [vmem:[#allocation6 + $0xf8] sm:$0xff]
          %v1292 = vld [vmem:[#allocation6 + $0x100] sm:$0xff]
          %v1293 = vld [vmem:[#allocation6 + $0x108] sm:$0xff]
          %v1294 = vld [vmem:[#allocation6 + $0x110] sm:$0xff]
          %v1295 = vld [vmem:[#allocation6 + $0x118] sm:$0xff]
          %v1296 = vld [vmem:[#allocation6 + $0x120] sm:$0xff]
          %v1297 = vld [vmem:[#allocation6 + $0x128] sm:$0xff]
          %v1298 = vld [vmem:[#allocation6 + $0x130] sm:$0xff]
          %v1299 = vld [vmem:[#allocation6 + $0x138] sm:$0xff]
          %v1300 = vld [vmem:[#allocation6 + $0x140] sm:$0xff]
          %v1301 = vld [vmem:[#allocation6 + $0x148] sm:$0xff]
          %v1302 = vld [vmem:[#allocation6 + $0x150] sm:$0xff]
          %v1303 = vld [vmem:[#allocation6 + $0x158] sm:$0xff]
          %v1304 = vld [vmem:[#allocation6 + $0x160] sm:$0xff]
          %v1305 = vld [vmem:[#allocation6 + $0x168] sm:$0xff]
          %v1306 = vld [vmem:[#allocation6 + $0x170] sm:$0xff]
          %v1307 = vld [vmem:[#allocation6 + $0x178] sm:$0xff]
          %v1308 = vld [vmem:[#allocation6 + $0x180] sm:$0xff]
          %v1309 = vld [vmem:[#allocation6 + $0x188] sm:$0xff]
          %v1310 = vld [vmem:[#allocation6 + $0x190] sm:$0xff]
          %v1311 = vld [vmem:[#allocation6 + $0x198] sm:$0xff]
          %v1312 = vld [vmem:[#allocation6 + $0x1a0] sm:$0xff]
          %v1313 = vld [vmem:[#allocation6 + $0x1a8] sm:$0xff]
          %v1314 = vld [vmem:[#allocation6 + $0x1b0] sm:$0xff]
          %v1315 = vld [vmem:[#allocation6 + $0x1b8] sm:$0xff]
          %v1316 = vld [vmem:[#allocation6 + $0x1c0] sm:$0xff]
          %s1317 = scalar_lea.vmem [#allocation6], 456
          %v1318 = vld [vmem:[%s1317] ss:$8 sm:$0x7]
          %v1320 = vlaneseq
          %v1321 = vshrl.u32 %v1320, 7
          %v1322 = vsub.s32 0, %v1321
          %v1323 = vrot.slane %v1318, %v1322
          %v1324 = vlaneseq
          %v1325 = vshrl.u32 %v1324, 7
          %v1326 = vsub.s32 1, %v1325
          %v1327 = vrot.slane %v1318, %v1326
          %v1328 = vlaneseq
          %v1329 = vshrl.u32 %v1328, 7
          %v1330 = vsub.s32 2, %v1329
          %v1331 = vrot.slane %v1318, %v1330
          %vm1335 = vcmask 785408
          %v1337 = vsel %vm1335, %v1280, 0
          %1339 = vmatprep.subr.mxu0 %v1282
          %1340 = vmatpush1.msra.mxu0 %v1281
          %1341 = vmatprep.subr.mxu0 %v1285
          %1342 = vmatpush1.msra.mxu0 %v1284
          %1343 = vmatprep.subr.mxu0 %v1288
          %1344 = vmatpush1.msra.mxu0 %v1287
          %1345 = vmatprep.subr.mxu0 %v1291
          %1346 = vmatpush1.msra.mxu0 %v1290
          %1347 = vmatprep.subr.mxu0 %v1294
          %1348 = vmatpush1.msra.mxu0 %v1293
          %1349 = vmatprep.subr.mxu0 %v1297
          %1350 = vmatpush1.msra.mxu0 %v1296
          %1351 = vmatprep.subr.mxu0 %v1300
          %1352 = vmatpush1.msra.mxu0 %v1299
          %1353 = vmatprep.subr.mxu0 %v1303
          %1354 = vmatpush1.msra.mxu0 %v1302
          %1355 = vmatprep.subr.mxu0 %v1306
          %1356 = vmatpush1.msra.mxu0 %v1305
          %1357 = vmatprep.subr.mxu0 %v1309
          %1358 = vmatpush1.msra.mxu0 %v1308
          %1359 = vmatprep.subr.mxu0 %v1312
          %1360 = vmatpush1.msra.mxu0 %v1311
          %1361 = vmatprep.subr.mxu0 %v1315
          %1362 = vmatpush1.msra.mxu0 %v1314
          %1363 = vmatprep.subr.mxu0 0.0
          %1364 = vmatpush1.msra.mxu0 0.0
          %1365 = vmatprep.subr.mxu0 0.0
          %1366 = vmatpush1.msra.mxu0 0.0
          %1367 = vmatprep.subr.mxu0 0.0
          %1368 = vmatpush1.msra.mxu0 0.0
          %1369 = vmatprep.subr.mxu0 0.0
          %1370 = vmatpush1.msra.mxu0 0.0
          %1371 = vmatprep.subr.mxu0 0.0
          %1372 = vmatpush1.msra.mxu0 0.0
          %1373 = vmatprep.subr.mxu0 0.0
          %1374 = vmatpush1.msra.mxu0 0.0
          %1375 = vmatprep.subr.mxu0 0.0
          %1376 = vmatpush1.msra.mxu0 0.0
          %1377 = vmatprep.subr.mxu0 0.0
          %1378 = vmatpush1.msra.mxu0 0.0
          %1379 = vmatprep.subr.mxu0 0.0
          %1380 = vmatpush1.msra.mxu0 0.0
          %1381 = vmatprep.subr.mxu0 0.0
          %1382 = vmatpush1.msra.mxu0 0.0
          %1383 = vmatprep.subr.mxu0 0.0
          %1384 = vmatpush1.msra.mxu0 0.0
          %1385 = vmatprep.subr.mxu0 0.0
          %1386 = vmatpush1.msra.mxu0 0.0
          %1387 = vmatprep.subr.mxu0 0.0
          %1388 = vmatpush1.msra.mxu0 0.0
          %1389 = vmatprep.subr.mxu0 0.0
          %1390 = vmatpush1.msra.mxu0 0.0
          %1391 = vmatprep.subr.mxu0 0.0
          %1392 = vmatpush1.msra.mxu0 0.0
          %1393 = vmatprep.subr.mxu0 0.0
          %1394 = vmatpush1.msra.mxu0 0.0
          %1395 = vmatprep.subr.mxu0 0.0
          %1396 = vmatpush1.msra.mxu0 0.0
          %1397 = vmatprep.subr.mxu0 0.0
          %1398 = vmatpush1.msra.mxu0 0.0
          %1399 = vmatprep.subr.mxu0 0.0
          %1400 = vmatpush1.msra.mxu0 0.0
          %1401 = vmatprep.subr.mxu0 0.0
          %1402 = vmatpush1.msra.mxu0 0.0
          %1403 = vmatprep.mubr.f32.mxu0 0.0
          %1404 = vmatmul.mubr.f32.gmra.mrb[0].mxu0 %v1337
          %v1405 = vpop.f32.mrb[0].mxu0
          %v1406 = vadd.f32 %v1323, %v1405
          %v1407 = vpop.f32.mrb[0].mxu0
          %v1408 = vadd.f32 %v1327, %v1407
          %1409 = vdwg.mxu0
          %1410 = vmatprep.subr.mxu0 0.0
          %1411 = vmatpush1.msra.mxu0 %v1283
          %1412 = vmatprep.subr.mxu0 0.0
          %1413 = vmatpush1.msra.mxu0 %v1286
          %1414 = vmatprep.subr.mxu0 0.0
          %1415 = vmatpush1.msra.mxu0 %v1289
          %1416 = vmatprep.subr.mxu0 0.0
          %1417 = vmatpush1.msra.mxu0 %v1292
          %1418 = vmatprep.subr.mxu0 0.0
          %1419 = vmatpush1.msra.mxu0 %v1295
          %1420 = vmatprep.subr.mxu0 0.0
          %1421 = vmatpush1.msra.mxu0 %v1298
          %1422 = vmatprep.subr.mxu0 0.0
          %1423 = vmatpush1.msra.mxu0 %v1301
          %1424 = vmatprep.subr.mxu0 0.0
          %1425 = vmatpush1.msra.mxu0 %v1304
          %1426 = vmatprep.subr.mxu0 0.0
          %1427 = vmatpush1.msra.mxu0 %v1307
          %1428 = vmatprep.subr.mxu0 0.0
          %1429 = vmatpush1.msra.mxu0 %v1310
          %1430 = vmatprep.subr.mxu0 0.0
          %1431 = vmatpush1.msra.mxu0 %v1313
          %1432 = vmatprep.subr.mxu0 0.0
          %1433 = vmatpush1.msra.mxu0 %v1316
          %1434 = vmatprep.subr.mxu0 0.0
          %1435 = vmatpush1.msra.mxu0 0.0
          %1436 = vmatprep.subr.mxu0 0.0
          %1437 = vmatpush1.msra.mxu0 0.0
          %1438 = vmatprep.subr.mxu0 0.0
          %1439 = vmatpush1.msra.mxu0 0.0
          %1440 = vmatprep.subr.mxu0 0.0
          %1441 = vmatpush1.msra.mxu0 0.0
          %1442 = vmatprep.subr.mxu0 0.0
          %1443 = vmatpush1.msra.mxu0 0.0
          %1444 = vmatprep.subr.mxu0 0.0
          %1445 = vmatpush1.msra.mxu0 0.0
          %1446 = vmatprep.subr.mxu0 0.0
          %1447 = vmatpush1.msra.mxu0 0.0
          %1448 = vmatprep.subr.mxu0 0.0
          %1449 = vmatpush1.msra.mxu0 0.0
          %1450 = vmatprep.subr.mxu0 0.0
          %1451 = vmatpush1.msra.mxu0 0.0
          %1452 = vmatprep.subr.mxu0 0.0
          %1453 = vmatpush1.msra.mxu0 0.0
          %1454 = vmatprep.subr.mxu0 0.0
          %1455 = vmatpush1.msra.mxu0 0.0
          %1456 = vmatprep.subr.mxu0 0.0
          %1457 = vmatpush1.msra.mxu0 0.0
          %1458 = vmatprep.subr.mxu0 0.0
          %1459 = vmatpush1.msra.mxu0 0.0
          %1460 = vmatprep.subr.mxu0 0.0
          %1461 = vmatpush1.msra.mxu0 0.0
          %1462 = vmatprep.subr.mxu0 0.0
          %1463 = vmatpush1.msra.mxu0 0.0
          %1464 = vmatprep.subr.mxu0 0.0
          %1465 = vmatpush1.msra.mxu0 0.0
          %1466 = vmatprep.subr.mxu0 0.0
          %1467 = vmatpush1.msra.mxu0 0.0
          %1468 = vmatprep.subr.mxu0 0.0
          %1469 = vmatpush1.msra.mxu0 0.0
          %1470 = vmatprep.subr.mxu0 0.0
          %1471 = vmatpush1.msra.mxu0 0.0
          %1472 = vmatprep.subr.mxu0 0.0
          %1473 = vmatpush1.msra.mxu0 0.0
          %1474 = vmatprep.mubr.f32.mxu0 0.0
          %1475 = vmatmul.mubr.f32.gmra.mrb[0].mxu0 %v1337
          %v1476 = vpop.f32.mrb[0].mxu0
          %v1477 = vadd.f32 %v1331, %v1476
          %v1478 = vpop.f32.mrb[0].mxu0
          %1479 = vdwg.mxu0
          %v1480 = vmul.f32 %v1406, 0.01
          %v1481 = vmul.f32 %v1408, 0.01
          %v1482 = vmul.f32 %v1477, 0.01
          %v1483 = vmax.f32 %v1406, %v1480
          %v1484 = vmax.f32 %v1408, %v1481
          %v1485 = vmax.f32 %v1477, %v1482
          %s1486 = scalar_lea.vmem [#allocation8], 24
          %v1487 = vld [vmem:[%s1486] ss:$8 sm:$0x7]
          %v1489 = vlaneseq
          %v1490 = vshrl.u32 %v1489, 7
          %v1491 = vsub.s32 0, %v1490
          %v1492 = vrot.slane %v1487, %v1491
          %v1493 = vlaneseq
          %v1494 = vshrl.u32 %v1493, 7
          %v1495 = vsub.s32 1, %v1494
          %v1496 = vrot.slane %v1487, %v1495
          %v1497 = vlaneseq
          %v1498 = vshrl.u32 %v1497, 7
          %v1499 = vsub.s32 2, %v1498
          %v1500 = vrot.slane %v1487, %v1499
          %v1504 = vmul.f32 %v1483, %v1492
          %v1505 = vmul.f32 %v1484, %v1496
          %v1506 = vmul.f32 %v1485, %v1500
          %s1507 = scalar_lea.vmem [#allocation8], 96
          %v1508 = vld [vmem:[%s1507] ss:$8 sm:$0x7]
          %v1510 = vlaneseq
          %v1511 = vshrl.u32 %v1510, 7
          %v1512 = vsub.s32 0, %v1511
          %v1513 = vrot.slane %v1508, %v1512
          %v1514 = vlaneseq
          %v1515 = vshrl.u32 %v1514, 7
          %v1516 = vsub.s32 1, %v1515
          %v1517 = vrot.slane %v1508, %v1516
          %v1518 = vlaneseq
          %v1519 = vshrl.u32 %v1518, 7
          %v1520 = vsub.s32 2, %v1519
          %v1521 = vrot.slane %v1508, %v1520
          %v1525 = vadd.f32 %v1504, %v1513
          %v1526 = vadd.f32 %v1505, %v1517
          %v1527 = vadd.f32 %v1506, %v1521
          %v1528 = vld [vmem:[#allocation6 + $0x210] sm:$0xff]
          %v1529 = vld [vmem:[#allocation6 + $0x228] sm:$0xff]
          %v1530 = vld [vmem:[#allocation6 + $0x240] sm:$0xff]
          %v1531 = vld [vmem:[#allocation6 + $0x258] sm:$0xff]
          %v1532 = vld [vmem:[#allocation6 + $0x270] sm:$0xff]
          %v1533 = vld [vmem:[#allocation6 + $0x288] sm:$0xff]
          %v1534 = vld [vmem:[#allocation6 + $0x2a0] sm:$0xff]
          %v1535 = vld [vmem:[#allocation6 + $0x2b8] sm:$0xff]
          %v1536 = vld [vmem:[#allocation6 + $0x2d0] sm:$0xff]
          %v1537 = vld [vmem:[#allocation6 + $0x2e8] sm:$0xff]
          %v1538 = vld [vmem:[#allocation6 + $0x300] sm:$0xff]
          %v1539 = vld [vmem:[#allocation6 + $0x318] sm:$0xff]
          %v1540 = vld [vmem:[#allocation6 + $0x330] sm:$0xff]
          %v1541 = vld [vmem:[#allocation6 + $0x348] sm:$0xff]
          %v1542 = vld [vmem:[#allocation6 + $0x360] sm:$0xff]
          %v1543 = vld [vmem:[#allocation6 + $0x378] sm:$0xff]
          %v1544 = vld [vmem:[#allocation6 + $0x390] sm:$0xff]
          %v1545 = vld [vmem:[#allocation6 + $0x3a8] sm:$0xff]
          %v1546 = vld [vmem:[#allocation6 + $0x3c0] sm:$0xff]
          %v1547 = vld [vmem:[#allocation6 + $0x3d8] sm:$0xff]
          %v1548 = vld [vmem:[#allocation6 + $0x3f0] sm:$0xff]
          %v1549 = vld [vmem:[#allocation6 + $0x408] sm:$0xff]
          %v1550 = vld [vmem:[#allocation6 + $0x420] sm:$0xff]
          %v1551 = vld [vmem:[#allocation6 + $0x438] sm:$0xff]
          %v1552 = vld [vmem:[#allocation6 + $0x450] sm:$0xff]
          %v1553 = vld [vmem:[#allocation6 + $0x468] sm:$0xff]
          %v1554 = vld [vmem:[#allocation6 + $0x480] sm:$0xff]
          %v1555 = vld [vmem:[#allocation6 + $0x498] sm:$0xff]
          %v1556 = vld [vmem:[#allocation6 + $0x4b0] sm:$0xff]
          %v1557 = vld [vmem:[#allocation6 + $0x4c8] sm:$0xff]
          %v1558 = vld [vmem:[#allocation6 + $0x4e0] sm:$0xff]
          %v1559 = vld [vmem:[#allocation6 + $0x4f8] sm:$0xff]
          %v1560 = vld [vmem:[#allocation6 + $0x510] sm:$0xff]
          %v1561 = vld [vmem:[#allocation6 + $0x528] sm:$0xff]
          %v1562 = vld [vmem:[#allocation6 + $0x540] sm:$0xff]
          %v1563 = vld [vmem:[#allocation6 + $0x558] sm:$0xff]
          %v1564 = vld [vmem:[#allocation6 + $0x570] ss:$0 sm:$0xff]
          %v1566 = vsel %vm187, %v1527, 0
          %1568 = vmatprep.subr.mxu0 0.0
          %1569 = vmatpush1.msra.mxu0 %v1528
          %1570 = vmatprep.subr.mxu0 0.0
          %1571 = vmatpush1.msra.mxu0 %v1529
          %1572 = vmatprep.subr.mxu0 0.0
          %1573 = vmatpush1.msra.mxu0 %v1530
          %1574 = vmatprep.subr.mxu0 0.0
          %1575 = vmatpush1.msra.mxu0 %v1531
          %1576 = vmatprep.subr.mxu0 0.0
          %1577 = vmatpush1.msra.mxu0 %v1532
          %1578 = vmatprep.subr.mxu0 0.0
          %1579 = vmatpush1.msra.mxu0 %v1533
          %1580 = vmatprep.subr.mxu0 0.0
          %1581 = vmatpush1.msra.mxu0 %v1534
          %1582 = vmatprep.subr.mxu0 0.0
          %1583 = vmatpush1.msra.mxu0 %v1535
          %1584 = vmatprep.subr.mxu0 0.0
          %1585 = vmatpush1.msra.mxu0 %v1536
          %1586 = vmatprep.subr.mxu0 0.0
          %1587 = vmatpush1.msra.mxu0 %v1537
          %1588 = vmatprep.subr.mxu0 0.0
          %1589 = vmatpush1.msra.mxu0 %v1538
          %1590 = vmatprep.subr.mxu0 0.0
          %1591 = vmatpush1.msra.mxu0 %v1539
          %1592 = vmatprep.subr.mxu0 0.0
          %1593 = vmatpush1.msra.mxu0 %v1540
          %1594 = vmatprep.subr.mxu0 0.0
          %1595 = vmatpush1.msra.mxu0 %v1541
          %1596 = vmatprep.subr.mxu0 0.0
          %1597 = vmatpush1.msra.mxu0 %v1542
          %1598 = vmatprep.subr.mxu0 0.0
          %1599 = vmatpush1.msra.mxu0 %v1543
          %1600 = vmatprep.subr.mxu0 0.0
          %1601 = vmatpush1.msra.mxu0 %v1544
          %1602 = vmatprep.subr.mxu0 0.0
          %1603 = vmatpush1.msra.mxu0 %v1545
          %1604 = vmatprep.subr.mxu0 0.0
          %1605 = vmatpush1.msra.mxu0 %v1546
          %1606 = vmatprep.subr.mxu0 0.0
          %1607 = vmatpush1.msra.mxu0 %v1547
          %1608 = vmatprep.subr.mxu0 0.0
          %1609 = vmatpush1.msra.mxu0 %v1548
          %1610 = vmatprep.subr.mxu0 0.0
          %1611 = vmatpush1.msra.mxu0 %v1549
          %1612 = vmatprep.subr.mxu0 0.0
          %1613 = vmatpush1.msra.mxu0 %v1550
          %1614 = vmatprep.subr.mxu0 0.0
          %1615 = vmatpush1.msra.mxu0 %v1551
          %1616 = vmatprep.subr.mxu0 0.0
          %1617 = vmatpush1.msra.mxu0 %v1552
          %1618 = vmatprep.subr.mxu0 0.0
          %1619 = vmatpush1.msra.mxu0 %v1553
          %1620 = vmatprep.subr.mxu0 0.0
          %1621 = vmatpush1.msra.mxu0 %v1554
          %1622 = vmatprep.subr.mxu0 0.0
          %1623 = vmatpush1.msra.mxu0 %v1555
          %1624 = vmatprep.subr.mxu0 0.0
          %1625 = vmatpush1.msra.mxu0 %v1556
          %1626 = vmatprep.subr.mxu0 0.0
          %1627 = vmatpush1.msra.mxu0 %v1557
          %1628 = vmatprep.subr.mxu0 0.0
          %1629 = vmatpush1.msra.mxu0 %v1558
          %1630 = vmatprep.subr.mxu0 0.0
          %1631 = vmatpush1.msra.mxu0 %v1559
          %1632 = vmatprep.mubr.f32.mxu0 %v1526
          %1633 = vmatmul.mubr.f32.gmra.mrb[0].mxu0 %v1525
          %v1634 = vpop.f32.mrb[0].mxu0
          %v1635 = vadd.f32 %v1564, %v1634
          %v1636 = vpop.f32.mrb[0].mxu0
          %1637 = vdwg.mxu0
          %1638 = vmatprep.subr.mxu0 0.0
          %1639 = vmatpush1.msra.mxu0 %v1560
          %1640 = vmatprep.subr.mxu0 0.0
          %1641 = vmatpush1.msra.mxu0 %v1561
          %1642 = vmatprep.subr.mxu0 0.0
          %1643 = vmatpush1.msra.mxu0 %v1562
          %1644 = vmatprep.subr.mxu0 0.0
          %1645 = vmatpush1.msra.mxu0 %v1563
          %1646 = vmatprep.subr.mxu0 0.0
          %1647 = vmatpush1.msra.mxu0 0.0
          %1648 = vmatprep.subr.mxu0 0.0
          %1649 = vmatpush1.msra.mxu0 0.0
          %1650 = vmatprep.subr.mxu0 0.0
          %1651 = vmatpush1.msra.mxu0 0.0
          %1652 = vmatprep.subr.mxu0 0.0
          %1653 = vmatpush1.msra.mxu0 0.0
          %1654 = vmatprep.subr.mxu0 0.0
          %1655 = vmatpush1.msra.mxu0 0.0
          %1656 = vmatprep.subr.mxu0 0.0
          %1657 = vmatpush1.msra.mxu0 0.0
          %1658 = vmatprep.subr.mxu0 0.0
          %1659 = vmatpush1.msra.mxu0 0.0
          %1660 = vmatprep.subr.mxu0 0.0
          %1661 = vmatpush1.msra.mxu0 0.0
          %1662 = vmatprep.subr.mxu0 0.0
          %1663 = vmatpush1.msra.mxu0 0.0
          %1664 = vmatprep.subr.mxu0 0.0
          %1665 = vmatpush1.msra.mxu0 0.0
          %1666 = vmatprep.subr.mxu0 0.0
          %1667 = vmatpush1.msra.mxu0 0.0
          %1668 = vmatprep.subr.mxu0 0.0
          %1669 = vmatpush1.msra.mxu0 0.0
          %1670 = vmatprep.subr.mxu0 0.0
          %1671 = vmatpush1.msra.mxu0 0.0
          %1672 = vmatprep.subr.mxu0 0.0
          %1673 = vmatpush1.msra.mxu0 0.0
          %1674 = vmatprep.subr.mxu0 0.0
          %1675 = vmatpush1.msra.mxu0 0.0
          %1676 = vmatprep.subr.mxu0 0.0
          %1677 = vmatpush1.msra.mxu0 0.0
          %1678 = vmatprep.subr.mxu0 0.0
          %1679 = vmatpush1.msra.mxu0 0.0
          %1680 = vmatprep.subr.mxu0 0.0
          %1681 = vmatpush1.msra.mxu0 0.0
          %1682 = vmatprep.subr.mxu0 0.0
          %1683 = vmatpush1.msra.mxu0 0.0
          %1684 = vmatprep.subr.mxu0 0.0
          %1685 = vmatpush1.msra.mxu0 0.0
          %1686 = vmatprep.subr.mxu0 0.0
          %1687 = vmatpush1.msra.mxu0 0.0
          %1688 = vmatprep.subr.mxu0 0.0
          %1689 = vmatpush1.msra.mxu0 0.0
          %1690 = vmatprep.subr.mxu0 0.0
          %1691 = vmatpush1.msra.mxu0 0.0
          %1692 = vmatprep.subr.mxu0 0.0
          %1693 = vmatpush1.msra.mxu0 0.0
          %1694 = vmatprep.subr.mxu0 0.0
          %1695 = vmatpush1.msra.mxu0 0.0
          %1696 = vmatprep.subr.mxu0 0.0
          %1697 = vmatpush1.msra.mxu0 0.0
          %1698 = vmatprep.subr.mxu0 0.0
          %1699 = vmatpush1.msra.mxu0 0.0
          %1700 = vmatprep.subr.mxu0 0.0
          %1701 = vmatpush1.msra.mxu0 0.0
          %1702 = vmatprep.mubr.f32.mxu0 0.0
          %1703 = vmatmul.mubr.f32.gmra.mrb[0].mxu0 %v1566
          %v1704 = vpop.f32.mrb[0].mxu0
          %v1705 = vadd.f32 %v1635, %v1704
          %v1706 = vpop.f32.mrb[0].mxu0
          %1707 = vdwg.mxu0
          %v1708 = vmul.f32 %v1705, 0.01
          %v1709 = vmax.f32 %v1705, %v1708
          // Predicated region
          $region77: #{tpu_custom_call.1} parent=75 // pred_check
            %p1710 = pneg %p158
          $region78: #{tpu_custom_call.1} parent=75 // pred_check_branch
            %1712 = sbr.rel (%p1710) target = $region80
          $region79: #{tpu_custom_call.1} parent=75 // pred_region
            %1713 = vst [vmem:[#allocation2] sm:$0xff] 0.0
            %1714 = vst [vmem:[#allocation2 + $0x8] sm:$0xff] 0.0
            %1715 = vst [vmem:[#allocation2 + $0x10] sm:$0xff] 0.0
            %1716 = vst [vmem:[#allocation2 + $0x18] sm:$0xff] 0.0
            %1717 = vst [vmem:[#allocation2 + $0x20] sm:$0xff] 0.0
            %1718 = vst [vmem:[#allocation2 + $0x28] sm:$0xff] 0.0
            %v1719 = vlaneseq
            %v1720 = vand.u32 %v1719, 127
            %vm1721 = vcmp.ge.s32.totalorder %v1720, 12
            %v1722 = vsel %vm1721, 1, 0
            %vm1723 = vcmp.ge.s32.totalorder %v1720, 24
            %v1724 = vsel %vm1723, 1, 0
            %v1725 = vadd.s32 %v1722, %v1724
            %vm1726 = vcmp.ge.s32.totalorder %v1720, 36
            %v1727 = vsel %vm1726, 1, 0
            %v1728 = vadd.s32 %v1725, %v1727
            %vm1729 = vcmp.ge.s32.totalorder %v1720, 48
            %v1730 = vsel %vm1729, 1, 0
            %v1731 = vadd.s32 %v1728, %v1730
            %vm1732 = vcmp.ge.s32.totalorder %v1720, 60
            %v1733 = vsel %vm1732, 1, 0
            %v1734 = vadd.s32 %v1731, %v1733
            %vm1735 = vcmp.ge.s32.totalorder %v1720, 72
            %v1736 = vsel %vm1735, 1, 0
            %v1737 = vadd.s32 %v1734, %v1736
            %vm1738 = vcmp.ge.s32.totalorder %v1720, 84
            %v1739 = vsel %vm1738, 1, 0
            %v1740 = vadd.s32 %v1737, %v1739
            %v1741 = vlaneseq
            %v1742 = vshrl.u32 %v1741, 7
            %s1743 = smul.u32 %s21, 8
            %v1744 = vstv %s1743
            %v1745 = vadd.s32 %v1744, %v1742
            %v1746 = vmul.u32 %v1745, 8
            %v1747 = vadd.s32 %v1746, %v1740
            %vm1748 = vcmp.lt.s32.totalorder %v1747, 8
            %v1749 = vsel %vm1748, %v1709, 0.0
            %v1750 = vld [vmem:[#allocation2] ss:$0 sm:$0xff]
            %v1751 = vsel %vm1335, %v1749, 0.0
            %v1752 = vrot.slane %v1751, 4
            %v1753 = vadd.f32 %v1751, %v1752
            %v1754 = vrot.slane %v1753, 2
            %v1755 = vadd.f32 %v1753, %v1754
            %v1756 = vrot.slane %v1755, 1
            %v1757 = vadd.f32 %v1755, %v1756
            %v1758 = vadd.f32 %v1750, %v1757
            %vm1759 = vcmask 778240
            %1760 = vst.msk [vmem:[#allocation2] sm:$0x1] %vm1759, %v1758
            %v1761 = vld [vmem:[#allocation2 + $0x18] ss:$0 sm:$0xff]
            %v1762 = vmul.f32 %v1749, %v1749
            %v1763 = vsel %vm1335, %v1762, 0.0
            %v1764 = vrot.slane %v1763, 4
            %v1765 = vadd.f32 %v1763, %v1764
            %v1766 = vrot.slane %v1765, 2
            %v1767 = vadd.f32 %v1765, %v1766
            %v1768 = vrot.slane %v1767, 1
            %v1769 = vadd.f32 %v1767, %v1768
            %v1770 = vadd.f32 %v1761, %v1769
            %1771 = vst.msk [vmem:[#allocation2 + $0x18] sm:$0x1] %vm1759, %v1770
          $region80: #{tpu_custom_call.1} parent=75 // pred_fallthru
            _
          %p1772 = scmp.ne.s32.totalorder %s21, 0
          // Predicated region
          $region81: #{tpu_custom_call.1} parent=75 // pred_check
            %p1773 = pneg %p1772
          $region82: #{tpu_custom_call.1} parent=75 // pred_check_branch
            %1775 = sbr.rel (%p1773) target = $region84
          $region83: #{tpu_custom_call.1} parent=75 // pred_region
            %v1776 = vld [vmem:[#allocation2] ss:$0 sm:$0xff]
            %v1777 = vsel %vm1335, %v1709, 0.0
            %v1778 = vrot.slane %v1777, 4
            %v1779 = vadd.f32 %v1777, %v1778
            %v1780 = vrot.slane %v1779, 2
            %v1781 = vadd.f32 %v1779, %v1780
            %v1782 = vrot.slane %v1781, 1
            %v1783 = vadd.f32 %v1781, %v1782
            %v1784 = vadd.f32 %v1776, %v1783
            %vm1785 = vcmask 778240
            %1786 = vst.msk [vmem:[#allocation2] sm:$0x1] %vm1785, %v1784
            %v1787 = vld [vmem:[#allocation2 + $0x18] ss:$0 sm:$0xff]
            %v1788 = vmul.f32 %v1709, %v1709
            %v1789 = vsel %vm1335, %v1788, 0.0
            %v1790 = vrot.slane %v1789, 4
            %v1791 = vadd.f32 %v1789, %v1790
            %v1792 = vrot.slane %v1791, 2
            %v1793 = vadd.f32 %v1791, %v1792
            %v1794 = vrot.slane %v1793, 1
            %v1795 = vadd.f32 %v1793, %v1794
            %v1796 = vadd.f32 %v1787, %v1795
            %1797 = vst.msk [vmem:[#allocation2 + $0x18] sm:$0x1] %vm1785, %v1796
          $region84: #{tpu_custom_call.1} parent=75 // pred_fallthru
            _
          %v1798 = vld [vmem:[#allocation6 + $0x588] ss:$0 sm:$0xff]
          %v1799 = vld [vmem:[#allocation6 + $0x5a0] ss:$0 sm:$0xff]
          // Predicated region
          $region85: #{tpu_custom_call.1} parent=75 // pred_check
            %p1800 = pneg %p158
          $region86: #{tpu_custom_call.1} parent=75 // pred_check_branch
            %1802 = sbr.rel (%p1800) target = $region88
          $region87: #{tpu_custom_call.1} parent=75 // pred_region
            %v1803 = vld [vmem:[#allocation2] ss:$0 sm:$0xff]
            %v1804 = vld [vmem:[#allocation2 + $0x18] ss:$0 sm:$0xff]
            %1806 = vrot.lane.b32.xlu0 %v1803, 116
            %v1807 = vpop.permute.xlu0 %1806
            %v1809 = vadd.f32 %v1803, %v1807
            %1811 = vrot.lane.b32.xlu0 %v1804, 116
            %v1812 = vpop.permute.xlu0 %1811
            %v1814 = vadd.f32 %v1804, %v1812
            %1815 = vrot.lane.b32.xlu0 %v1803, 104
            %v1816 = vpop.permute.xlu0 %1815
            %v1818 = vadd.f32 %v1809, %v1816
            %1819 = vrot.lane.b32.xlu0 %v1804, 104
            %v1820 = vpop.permute.xlu0 %1819
            %v1822 = vadd.f32 %v1814, %v1820
            %1823 = vrot.lane.b32.xlu0 %v1803, 92
            %v1824 = vpop.permute.xlu0 %1823
            %v1826 = vadd.f32 %v1818, %v1824
            %1827 = vrot.lane.b32.xlu0 %v1804, 92
            %v1828 = vpop.permute.xlu0 %1827
            %v1830 = vadd.f32 %v1822, %v1828
            %1831 = vrot.lane.b32.xlu0 %v1803, 80
            %v1832 = vpop.permute.xlu0 %1831
            %v1834 = vadd.f32 %v1826, %v1832
            %1835 = vrot.lane.b32.xlu0 %v1804, 80
            %v1836 = vpop.permute.xlu0 %1835
            %v1838 = vadd.f32 %v1830, %v1836
            %1839 = vrot.lane.b32.xlu0 %v1803, 68
            %v1840 = vpop.permute.xlu0 %1839
            %v1842 = vadd.f32 %v1834, %v1840
            %1843 = vrot.lane.b32.xlu0 %v1804, 68
            %v1844 = vpop.permute.xlu0 %1843
            %v1846 = vadd.f32 %v1838, %v1844
            %1847 = vrot.lane.b32.xlu0 %v1803, 56
            %v1848 = vpop.permute.xlu0 %1847
            %v1850 = vadd.f32 %v1842, %v1848
            %1851 = vrot.lane.b32.xlu0 %v1804, 56
            %v1852 = vpop.permute.xlu0 %1851
            %v1854 = vadd.f32 %v1846, %v1852
            %1855 = vrot.lane.b32.xlu0 %v1803, 44
            %v1856 = vpop.permute.xlu0 %1855
            %v1858 = vadd.f32 %v1850, %v1856
            %1859 = vrot.lane.b32.xlu0 %v1804, 44
            %v1860 = vpop.permute.xlu0 %1859
            %v1862 = vadd.f32 %v1854, %v1860
            %v1863 = vmul.f32 %v1858, 0.125
            %v1864 = vmul.f32 %v1862, 0.125
            %v1865 = vmul.f32 %v1863, %v1863
            %v1866 = vsub.f32 %v1864, %v1865
            %v1867 = vmax.f32 %v1866, 0.0
            %v1868 = vadd.f32 %v1867, 1e-05
            %v1869 = vrsqrt.pop %v1868
            %1871 = vrot.lane.b32.xlu0 %v1869, 12
            %v1872 = vpop.permute.xlu0 %1871
            %1874 = vrot.lane.b32.xlu0 %v1869, 24
            %v1875 = vpop.permute.xlu0 %1874
            %1877 = vrot.lane.b32.xlu0 %v1869, 36
            %v1878 = vpop.permute.xlu0 %1877
            %1880 = vrot.lane.b32.xlu0 %v1869, 48
            %v1881 = vpop.permute.xlu0 %1880
            %1883 = vrot.lane.b32.xlu0 %v1869, 60
            %v1884 = vpop.permute.xlu0 %1883
            %1886 = vrot.lane.b32.xlu0 %v1869, 72
            %v1887 = vpop.permute.xlu0 %1886
            %1889 = vrot.lane.b32.xlu0 %v1869, 84
            %v1890 = vpop.permute.xlu0 %1889
            %vm1892 = vcmask 97280
            %v1893 = vsel %vm1892, %v1869, %v1872
            %vm1894 = vcmask 195584
            %v1895 = vsel %vm1894, %v1893, %v1875
            %vm1896 = vcmask 293888
            %v1897 = vsel %vm1896, %v1895, %v1878
            %vm1898 = vcmask 392192
            %v1899 = vsel %vm1898, %v1897, %v1881
            %vm1900 = vcmask 490496
            %v1901 = vsel %vm1900, %v1899, %v1884
            %vm1902 = vcmask 588800
            %v1903 = vsel %vm1902, %v1901, %v1887
            %vm1904 = vcmask 687104
            %v1905 = vsel %vm1904, %v1903, %v1890
            %v1906 = vmul.f32 %v1905, %v1798
            %1908 = vrot.lane.b32.xlu0 %v1863, 12
            %v1909 = vpop.permute.xlu0 %1908
            %1911 = vrot.lane.b32.xlu0 %v1863, 24
            %v1912 = vpop.permute.xlu0 %1911
            %1914 = vrot.lane.b32.xlu0 %v1863, 36
            %v1915 = vpop.permute.xlu0 %1914
            %1917 = vrot.lane.b32.xlu0 %v1863, 48
            %v1918 = vpop.permute.xlu0 %1917
            %1920 = vrot.lane.b32.xlu0 %v1863, 60
            %v1921 = vpop.permute.xlu0 %1920
            %1923 = vrot.lane.b32.xlu0 %v1863, 72
            %v1924 = vpop.permute.xlu0 %1923
            %1926 = vrot.lane.b32.xlu0 %v1863, 84
            %v1927 = vpop.permute.xlu0 %1926
            %v1929 = vsel %vm1892, %v1863, %v1909
            %v1930 = vsel %vm1894, %v1929, %v1912
            %v1931 = vsel %vm1896, %v1930, %v1915
            %v1932 = vsel %vm1898, %v1931, %v1918
            %v1933 = vsel %vm1900, %v1932, %v1921
            %v1934 = vsel %vm1902, %v1933, %v1924
            %v1935 = vsel %vm1904, %v1934, %v1927
            %v1936 = vmul.f32 %v1935, %v1906
            %v1937 = vsub.f32 %v1799, %v1936
            %vm1938 = vcmask 778240
            %1939 = vst.msk [vmem:[#allocation8 + $0x30] sm:$0x1] %vm1938, %v1906
            %1940 = vst.msk [vmem:[#allocation8 + $0x78] sm:$0x1] %vm1938, %v1937
          $region88: #{tpu_custom_call.1} parent=75 // pred_fallthru
            _
        $region76: #{tpu_custom_call.1} parent=27 // pred_fallthru
          _
        // Predicated region
        $region89: #{tpu_custom_call.1} parent=27 // pred_check
          %p1941 = pneg %p88
        $region90: #{tpu_custom_call.1} parent=27 // pred_check_branch
          %1943 = sbr.rel (%p1941) target = $region92
        $region91: #{tpu_custom_call.1} parent=27 // pred_region
          %s1945 = ssub.s32 2304, 2304
          %1946 = vsyncadd [#allocation5], %s1945
          %s1947 = sshll.u32 [#allocation8], 4
          %s1948 = int_to_ptr.vmem [resolvable:$true] %s1947
          %1953 = dma.vmem_to_hbm [thread:$0]  %s1948, 2304, %s2, [#allocation5], 384, 384, 24
        $region92: #{tpu_custom_call.1} parent=27 // pred_fallthru
          _
        // Predicated region
        $region93: #{tpu_custom_call.1} parent=27 // pred_check
          %p1954 = pneg %p88
        $region94: #{tpu_custom_call.1} parent=27 // pred_check_branch
          %1956 = sbr.rel (%p1954) target = $region96
        $region95: #{tpu_custom_call.1} parent=27 // pred_region
          %1957 = dma.done [#allocation5], 2304
        $region96: #{tpu_custom_call.1} parent=27 // pred_fallthru
          _
      $region28: #{tpu_custom_call.1} parent=5 // pred_fallthru
        _
      %p1958 = scmp.le.s32.totalorder 2, %s11
      // Predicated region
      $region97: #{tpu_custom_call.1} parent=5 // pred_check
        %p1959 = pneg %p1958
      $region98: #{tpu_custom_call.1} parent=5 // pred_check_branch
        %1961 = sbr.rel (%p1959) target = $region100
      $region99: #{tpu_custom_call.1} parent=5 // pred_region
        %s1962 = ssub.s32 %s11, 2
      $region100: #{tpu_custom_call.1} parent=5 // pred_fallthru
        _
    $region6: #{tpu_custom_call.1} parent=1 // loop_footer
      %s15 = sadd.s32 1, %s11
    $region7: #{tpu_custom_call.1} parent=1 // loop_footer_branch
      %10 = sbr.rel target = $region3
    $region8: #{tpu_custom_call.1} parent=1 // loop_exit
      _
    %1963 = vsyncpa [#allocation4], 1
    %s1964 = scalar_lea.sflag [#allocation4], 1
    %1965 = vsyncpa %s1964, 1
    %1966 = vsyncpa [#allocation7], 1
    %1967 = vsyncpa [#allocation5], 1
    %s1968 = scalar_lea.sflag [#allocation5], 1
    %1969 = vsyncpa %s1968, 1

</llo_original>
